<compile_context>
chip_gen: v5e
topology: v5e:2x2
jax: 0.10.0
libtpu: 0.0.40
codegen_flags: <defaults>
</compile_context>

<pallas_src>
import functools

import jax
import jax.numpy as jnp
from jax import lax
from jax.experimental import pallas as pl
from jax.experimental.pallas import tpu as pltpu


def _lstm_fc_kernel(xproj_ref, w_hh_ref, fc1_w_ref, fc1_b_ref,
                    fc2_w_ref, fc2_b_ref, out_ref, *, seq_len, hidden_size,
                    unroll):
    H = hidden_size
    B = xproj_ref.shape[1]

    w_hh = w_hh_ref[...]                       # (H, 4H), loaded once

    def step(t, carry):
        h, c = carry
        # x_t @ W_ih + b_ih + b_hh was precomputed in the wrapper; only the
        # K=H recurrence matmul remains per step.
        gates = xproj_ref[t] + jnp.dot(h, w_hh,
                                       preferred_element_type=jnp.float32)
        # PyTorch LSTM gate order: input, forget, cell(g), output.
        i_g = jax.nn.sigmoid(gates[:, 0 * H:1 * H])
        f_g = jax.nn.sigmoid(gates[:, 1 * H:2 * H])
        g_g = jnp.tanh(gates[:, 2 * H:3 * H])
        o_g = jax.nn.sigmoid(gates[:, 3 * H:4 * H])
        c_new = f_g * c + i_g * g_g
        h_new = o_g * jnp.tanh(c_new)
        return h_new, c_new

    h0 = jnp.zeros((B, H), jnp.float32)
    c0 = jnp.zeros((B, H), jnp.float32)
    h, _ = lax.fori_loop(0, seq_len, step, (h0, c0), unroll=unroll)

    # FC head on the last hidden state: Linear -> ReLU -> (Dropout=id) ->
    # Linear -> ReLU.
    y = jnp.dot(h, fc1_w_ref[...],
                preferred_element_type=jnp.float32) + fc1_b_ref[...]
    y = jnp.maximum(y, 0.0)
    # TODO(synk): nn.Dropout() implemented as identity (inference semantics).
    z = jnp.dot(y, fc2_w_ref[...],
                preferred_element_type=jnp.float32) + fc2_b_ref[...]
    out_ref[...] = jnp.maximum(z, 0.0)


def base_model_forward(x, params):
    """x: (B, T, F) float32, batch-first like the PyTorch module."""
    B, T, F = x.shape
    H = params["w_hh"].shape[0]
    OUT = params["fc2_w"].shape[1]

    # Hoisted input projection: (T, B, F) @ (F, 4H) + b -> (T, B, 4H),
    # time-major so the kernel indexes timesteps along the leading axis.
    x_tm = jnp.transpose(x.astype(jnp.float32), (1, 0, 2))
    x_proj = jnp.einsum("tbf,fg->tbg", x_tm, params["w_ih"]) + params["b"]

    # Bounded unroll: full unroll for short windows, 8-wide for long ones
    # (e.g. the real TRAIN_WINDOW_SIZE=90) to keep code size in check.
    unroll = T if T <= 8 else 8

    kernel = functools.partial(_lstm_fc_kernel, seq_len=T, hidden_size=H,
                               unroll=unroll)
    vmem = pl.BlockSpec(memory_space=pltpu.MemorySpace.VMEM)

    out = pl.pallas_call(
        kernel,
        out_shape=jax.ShapeDtypeStruct((B, OUT), jnp.float32),
        in_specs=[vmem] * 6,
        out_specs=vmem,
        compiler_params=pltpu.CompilerParams(
            vmem_limit_bytes=64 << 20),
    )(x_proj, params["w_hh"], params["fc1_w"], params["fc1_b"],
      params["fc2_w"], params["fc2_b"])
    return out


def init_params(key, input_size=5, hidden_size=128, output_size=21):
    """Deterministic synthetic parameters matching the PyTorch module shapes."""
    keys = jax.random.split(key, 8)
    k = 1.0 / jnp.sqrt(hidden_size)
    w_ih = jax.random.uniform(keys[0], (4 * hidden_size, input_size),
                              minval=-k, maxval=k, dtype=jnp.float32)
    w_hh = jax.random.uniform(keys[1], (4 * hidden_size, hidden_size),
                              minval=-k, maxval=k, dtype=jnp.float32)
    b_ih = jax.random.uniform(keys[2], (4 * hidden_size,),
                              minval=-k, maxval=k, dtype=jnp.float32)
    b_hh = jax.random.uniform(keys[3], (4 * hidden_size,),
                              minval=-k, maxval=k, dtype=jnp.float32)

    h2 = hidden_size // 2
    k1 = 1.0 / jnp.sqrt(hidden_size)
    fc1_w = jax.random.uniform(keys[4], (h2, hidden_size),
                               minval=-k1, maxval=k1, dtype=jnp.float32)
    fc1_b = jax.random.uniform(keys[5], (h2,),
                               minval=-k1, maxval=k1, dtype=jnp.float32)
    k2 = 1.0 / jnp.sqrt(h2)
    fc2_w = jax.random.uniform(keys[6], (output_size, h2),
                               minval=-k2, maxval=k2, dtype=jnp.float32)
    fc2_b = jax.random.uniform(keys[7], (output_size,),
                               minval=-k2, maxval=k2, dtype=jnp.float32)

    # Pack for the kernel: pre-transpose so every matmul is row-major x @ W.
    return dict(
        w_ih=w_ih.T,                         # (F, 4H)
        w_hh=w_hh.T,                         # (H, 4H)
        b=(b_ih + b_hh).reshape(1, -1),      # (1, 4H)
        fc1_w=fc1_w.T,                       # (H, H//2)
        fc1_b=fc1_b.reshape(1, -1),          # (1, H//2)
        fc2_w=fc2_w.T,                       # (H//2, OUT)
        fc2_b=fc2_b.reshape(1, -1),          # (1, OUT)
    )


def reference_forward(x, params):
    """Pure-JAX reference of the same math (for correctness check)."""
    B, T, F = x.shape
    H = params["w_hh"].shape[0]
    h = jnp.zeros((B, H), jnp.float32)
    c = jnp.zeros((B, H), jnp.float32)
    for t in range(T):
        gates = x[:, t] @ params["w_ih"] + h @ params["w_hh"] + params["b"]
        i = jax.nn.sigmoid(gates[:, :H])
        f = jax.nn.sigmoid(gates[:, H:2 * H])
        g = jnp.tanh(gates[:, 2 * H:3 * H])
        o = jax.nn.sigmoid(gates[:, 3 * H:])
        c = f * c + i * g
        h = o * jnp.tanh(c)
    y = jnp.maximum(h @ params["fc1_w"] + params["fc1_b"], 0.0)
    return jnp.maximum(y @ params["fc2_w"] + params["fc2_b"], 0.0)


if __name__ == "__main__":
    key = jax.random.PRNGKey(0)
    kp, kx = jax.random.split(key)

    # Small shapes consistent with the module: input_size=5, output_size=21.
    B, T, F, H, OUT = 8, 8, 5, 128, 21
    params = init_params(kp, input_size=F, hidden_size=H, output_size=OUT)
    x = jax.random.normal(kx, (B, T, F), jnp.float32)

    out = base_model_forward(x, params)
    jax.block_until_ready(out)

    ref = reference_forward(x, params)
    assert out.shape == (B, OUT), out.shape
    assert jnp.allclose(out, ref, atol=1e-4, rtol=1e-4), \
        float(jnp.max(jnp.abs(out - ref)))
    print("KERNEL_OK")
</pallas_src>

<mosaic_0001>
module attributes {stable_mosaic.version = 11 : i64} {
  func.func @_lstm_fc_kernel(%arg0: memref<8x8x512xf32, #tpu.memory_space<vmem>>, %arg1: memref<128x512xf32, #tpu.memory_space<vmem>>, %arg2: memref<128x64xf32, #tpu.memory_space<vmem>>, %arg3: memref<1x64xf32, #tpu.memory_space<vmem>>, %arg4: memref<64x21xf32, #tpu.memory_space<vmem>>, %arg5: memref<1x21xf32, #tpu.memory_space<vmem>>, %arg6: memref<8x21xf32, #tpu.memory_space<vmem>>) attributes {dimension_semantics = [], scalar_prefetch = 0 : i64, scratch_operands = 0 : i64, tpu.core_type = #tpu.core_type<tc>} {
    %c0 = arith.constant 0 : index
    %c0_0 = arith.constant 0 : index
    %0 = vector.load %arg1[%c0, %c0_0] : memref<128x512xf32, #tpu.memory_space<vmem>>, vector<128x512xf32>
    %cst = arith.constant 0.000000e+00 : f32
    %1 = vector.broadcast %cst : f32 to vector<8x128xf32>
    %cst_1 = arith.constant 0.000000e+00 : f32
    %2 = vector.broadcast %cst_1 : f32 to vector<8x128xf32>
    %c0_i32 = arith.constant 0 : i32
    %3 = arith.index_cast %c0_i32 : i32 to index
    %c0_2 = arith.constant 0 : index
    %c0_3 = arith.constant 0 : index
    %4 = vector.load %arg0[%3, %c0_2, %c0_3] : memref<8x8x512xf32, #tpu.memory_space<vmem>>, vector<1x8x512xf32>
    %5 = vector.shape_cast %4 : vector<1x8x512xf32> to vector<8x512xf32>
    %cst_4 = arith.constant dense<0.000000e+00> : vector<8x512xf32>
    %6 = tpu.matmul %1, %0, %cst_4 {dimension_numbers = #tpu.dot_dimension_numbers<[1], [0], [0], [1], [0, 0, 1, 1], [], []>} : vector<8x128xf32>, vector<128x512xf32>, vector<8x512xf32> -> vector<8x512xf32>
    %7 = arith.addf %5, %6 : vector<8x512xf32>
    %8 = vector.extract_strided_slice %7 {offsets = [0, 0], sizes = [8, 128], strides = [1, 1]} : vector<8x512xf32> to vector<8x128xf32>
    %9 = arith.negf %8 : vector<8x128xf32>
    %10 = math.exp %9 : vector<8x128xf32>
    %cst_5 = arith.constant 1.000000e+00 : f32
    %11 = vector.broadcast %cst_5 : f32 to vector<8x128xf32>
    %12 = arith.addf %11, %10 : vector<8x128xf32>
    %13 = arith.divf %11, %12 : vector<8x128xf32>
    %14 = vector.extract_strided_slice %7 {offsets = [0, 128], sizes = [8, 128], strides = [1, 1]} : vector<8x512xf32> to vector<8x128xf32>
    %15 = arith.negf %14 : vector<8x128xf32>
    %16 = math.exp %15 : vector<8x128xf32>
    %cst_6 = arith.constant 1.000000e+00 : f32
    %17 = vector.broadcast %cst_6 : f32 to vector<8x128xf32>
    %18 = arith.addf %17, %16 : vector<8x128xf32>
    %19 = arith.divf %17, %18 : vector<8x128xf32>
    %20 = vector.extract_strided_slice %7 {offsets = [0, 256], sizes = [8, 128], strides = [1, 1]} : vector<8x512xf32> to vector<8x128xf32>
    %21 = math.tanh %20 : vector<8x128xf32>
    %22 = vector.extract_strided_slice %7 {offsets = [0, 384], sizes = [8, 128], strides = [1, 1]} : vector<8x512xf32> to vector<8x128xf32>
    %23 = arith.negf %22 : vector<8x128xf32>
    %24 = math.exp %23 : vector<8x128xf32>
    %cst_7 = arith.constant 1.000000e+00 : f32
    %25 = vector.broadcast %cst_7 : f32 to vector<8x128xf32>
    %26 = arith.addf %25, %24 : vector<8x128xf32>
    %27 = arith.divf %25, %26 : vector<8x128xf32>
    %28 = arith.mulf %19, %2 : vector<8x128xf32>
    %29 = arith.mulf %13, %21 : vector<8x128xf32>
    %30 = arith.addf %28, %29 : vector<8x128xf32>
    %31 = math.tanh %30 : vector<8x128xf32>
    %32 = arith.mulf %27, %31 : vector<8x128xf32>
    %c1_i32 = arith.constant 1 : i32
    %33 = arith.index_cast %c1_i32 : i32 to index
    %c0_8 = arith.constant 0 : index
    %c0_9 = arith.constant 0 : index
    %34 = vector.load %arg0[%33, %c0_8, %c0_9] : memref<8x8x512xf32, #tpu.memory_space<vmem>>, vector<1x8x512xf32>
    %35 = vector.shape_cast %34 : vector<1x8x512xf32> to vector<8x512xf32>
    %cst_10 = arith.constant dense<0.000000e+00> : vector<8x512xf32>
    %36 = tpu.matmul %32, %0, %cst_10 {dimension_numbers = #tpu.dot_dimension_numbers<[1], [0], [0], [1], [0, 0, 1, 1], [], []>} : vector<8x128xf32>, vector<128x512xf32>, vector<8x512xf32> -> vector<8x512xf32>
    %37 = arith.addf %35, %36 : vector<8x512xf32>
    %38 = vector.extract_strided_slice %37 {offsets = [0, 0], sizes = [8, 128], strides = [1, 1]} : vector<8x512xf32> to vector<8x128xf32>
    %39 = arith.negf %38 : vector<8x128xf32>
    %40 = math.exp %39 : vector<8x128xf32>
    %cst_11 = arith.constant 1.000000e+00 : f32
    %41 = vector.broadcast %cst_11 : f32 to vector<8x128xf32>
    %42 = arith.addf %41, %40 : vector<8x128xf32>
    %43 = arith.divf %41, %42 : vector<8x128xf32>
    %44 = vector.extract_strided_slice %37 {offsets = [0, 128], sizes = [8, 128], strides = [1, 1]} : vector<8x512xf32> to vector<8x128xf32>
    %45 = arith.negf %44 : vector<8x128xf32>
    %46 = math.exp %45 : vector<8x128xf32>
    %cst_12 = arith.constant 1.000000e+00 : f32
    %47 = vector.broadcast %cst_12 : f32 to vector<8x128xf32>
    %48 = arith.addf %47, %46 : vector<8x128xf32>
    %49 = arith.divf %47, %48 : vector<8x128xf32>
    %50 = vector.extract_strided_slice %37 {offsets = [0, 256], sizes = [8, 128], strides = [1, 1]} : vector<8x512xf32> to vector<8x128xf32>
    %51 = math.tanh %50 : vector<8x128xf32>
    %52 = vector.extract_strided_slice %37 {offsets = [0, 384], sizes = [8, 128], strides = [1, 1]} : vector<8x512xf32> to vector<8x128xf32>
    %53 = arith.negf %52 : vector<8x128xf32>
    %54 = math.exp %53 : vector<8x128xf32>
    %cst_13 = arith.constant 1.000000e+00 : f32
    %55 = vector.broadcast %cst_13 : f32 to vector<8x128xf32>
    %56 = arith.addf %55, %54 : vector<8x128xf32>
    %57 = arith.divf %55, %56 : vector<8x128xf32>
    %58 = arith.mulf %49, %30 : vector<8x128xf32>
    %59 = arith.mulf %43, %51 : vector<8x128xf32>
    %60 = arith.addf %58, %59 : vector<8x128xf32>
    %61 = math.tanh %60 : vector<8x128xf32>
    %62 = arith.mulf %57, %61 : vector<8x128xf32>
    %c2_i32 = arith.constant 2 : i32
    %63 = arith.index_cast %c2_i32 : i32 to index
    %c0_14 = arith.constant 0 : index
    %c0_15 = arith.constant 0 : index
    %64 = vector.load %arg0[%63, %c0_14, %c0_15] : memref<8x8x512xf32, #tpu.memory_space<vmem>>, vector<1x8x512xf32>
    %65 = vector.shape_cast %64 : vector<1x8x512xf32> to vector<8x512xf32>
    %cst_16 = arith.constant dense<0.000000e+00> : vector<8x512xf32>
    %66 = tpu.matmul %62, %0, %cst_16 {dimension_numbers = #tpu.dot_dimension_numbers<[1], [0], [0], [1], [0, 0, 1, 1], [], []>} : vector<8x128xf32>, vector<128x512xf32>, vector<8x512xf32> -> vector<8x512xf32>
    %67 = arith.addf %65, %66 : vector<8x512xf32>
    %68 = vector.extract_strided_slice %67 {offsets = [0, 0], sizes = [8, 128], strides = [1, 1]} : vector<8x512xf32> to vector<8x128xf32>
    %69 = arith.negf %68 : vector<8x128xf32>
    %70 = math.exp %69 : vector<8x128xf32>
    %cst_17 = arith.constant 1.000000e+00 : f32
    %71 = vector.broadcast %cst_17 : f32 to vector<8x128xf32>
    %72 = arith.addf %71, %70 : vector<8x128xf32>
    %73 = arith.divf %71, %72 : vector<8x128xf32>
    %74 = vector.extract_strided_slice %67 {offsets = [0, 128], sizes = [8, 128], strides = [1, 1]} : vector<8x512xf32> to vector<8x128xf32>
    %75 = arith.negf %74 : vector<8x128xf32>
    %76 = math.exp %75 : vector<8x128xf32>
    %cst_18 = arith.constant 1.000000e+00 : f32
    %77 = vector.broadcast %cst_18 : f32 to vector<8x128xf32>
    %78 = arith.addf %77, %76 : vector<8x128xf32>
    %79 = arith.divf %77, %78 : vector<8x128xf32>
    %80 = vector.extract_strided_slice %67 {offsets = [0, 256], sizes = [8, 128], strides = [1, 1]} : vector<8x512xf32> to vector<8x128xf32>
    %81 = math.tanh %80 : vector<8x128xf32>
    %82 = vector.extract_strided_slice %67 {offsets = [0, 384], sizes = [8, 128], strides = [1, 1]} : vector<8x512xf32> to vector<8x128xf32>
    %83 = arith.negf %82 : vector<8x128xf32>
    %84 = math.exp %83 : vector<8x128xf32>
    %cst_19 = arith.constant 1.000000e+00 : f32
    %85 = vector.broadcast %cst_19 : f32 to vector<8x128xf32>
    %86 = arith.addf %85, %84 : vector<8x128xf32>
    %87 = arith.divf %85, %86 : vector<8x128xf32>
    %88 = arith.mulf %79, %60 : vector<8x128xf32>
    %89 = arith.mulf %73, %81 : vector<8x128xf32>
    %90 = arith.addf %88, %89 : vector<8x128xf32>
    %91 = math.tanh %90 : vector<8x128xf32>
    %92 = arith.mulf %87, %91 : vector<8x128xf32>
    %c3_i32 = arith.constant 3 : i32
    %93 = arith.index_cast %c3_i32 : i32 to index
    %c0_20 = arith.constant 0 : index
    %c0_21 = arith.constant 0 : index
    %94 = vector.load %arg0[%93, %c0_20, %c0_21] : memref<8x8x512xf32, #tpu.memory_space<vmem>>, vector<1x8x512xf32>
    %95 = vector.shape_cast %94 : vector<1x8x512xf32> to vector<8x512xf32>
    %cst_22 = arith.constant dense<0.000000e+00> : vector<8x512xf32>
    %96 = tpu.matmul %92, %0, %cst_22 {dimension_numbers = #tpu.dot_dimension_numbers<[1], [0], [0], [1], [0, 0, 1, 1], [], []>} : vector<8x128xf32>, vector<128x512xf32>, vector<8x512xf32> -> vector<8x512xf32>
    %97 = arith.addf %95, %96 : vector<8x512xf32>
    %98 = vector.extract_strided_slice %97 {offsets = [0, 0], sizes = [8, 128], strides = [1, 1]} : vector<8x512xf32> to vector<8x128xf32>
    %99 = arith.negf %98 : vector<8x128xf32>
    %100 = math.exp %99 : vector<8x128xf32>
    %cst_23 = arith.constant 1.000000e+00 : f32
    %101 = vector.broadcast %cst_23 : f32 to vector<8x128xf32>
    %102 = arith.addf %101, %100 : vector<8x128xf32>
    %103 = arith.divf %101, %102 : vector<8x128xf32>
    %104 = vector.extract_strided_slice %97 {offsets = [0, 128], sizes = [8, 128], strides = [1, 1]} : vector<8x512xf32> to vector<8x128xf32>
    %105 = arith.negf %104 : vector<8x128xf32>
    %106 = math.exp %105 : vector<8x128xf32>
    %cst_24 = arith.constant 1.000000e+00 : f32
    %107 = vector.broadcast %cst_24 : f32 to vector<8x128xf32>
    %108 = arith.addf %107, %106 : vector<8x128xf32>
    %109 = arith.divf %107, %108 : vector<8x128xf32>
    %110 = vector.extract_strided_slice %97 {offsets = [0, 256], sizes = [8, 128], strides = [1, 1]} : vector<8x512xf32> to vector<8x128xf32>
    %111 = math.tanh %110 : vector<8x128xf32>
    %112 = vector.extract_strided_slice %97 {offsets = [0, 384], sizes = [8, 128], strides = [1, 1]} : vector<8x512xf32> to vector<8x128xf32>
    %113 = arith.negf %112 : vector<8x128xf32>
    %114 = math.exp %113 : vector<8x128xf32>
    %cst_25 = arith.constant 1.000000e+00 : f32
    %115 = vector.broadcast %cst_25 : f32 to vector<8x128xf32>
    %116 = arith.addf %115, %114 : vector<8x128xf32>
    %117 = arith.divf %115, %116 : vector<8x128xf32>
    %118 = arith.mulf %109, %90 : vector<8x128xf32>
    %119 = arith.mulf %103, %111 : vector<8x128xf32>
    %120 = arith.addf %118, %119 : vector<8x128xf32>
    %121 = math.tanh %120 : vector<8x128xf32>
    %122 = arith.mulf %117, %121 : vector<8x128xf32>
    %c4_i32 = arith.constant 4 : i32
    %123 = arith.index_cast %c4_i32 : i32 to index
    %c0_26 = arith.constant 0 : index
    %c0_27 = arith.constant 0 : index
    %124 = vector.load %arg0[%123, %c0_26, %c0_27] : memref<8x8x512xf32, #tpu.memory_space<vmem>>, vector<1x8x512xf32>
    %125 = vector.shape_cast %124 : vector<1x8x512xf32> to vector<8x512xf32>
    %cst_28 = arith.constant dense<0.000000e+00> : vector<8x512xf32>
    %126 = tpu.matmul %122, %0, %cst_28 {dimension_numbers = #tpu.dot_dimension_numbers<[1], [0], [0], [1], [0, 0, 1, 1], [], []>} : vector<8x128xf32>, vector<128x512xf32>, vector<8x512xf32> -> vector<8x512xf32>
    %127 = arith.addf %125, %126 : vector<8x512xf32>
    %128 = vector.extract_strided_slice %127 {offsets = [0, 0], sizes = [8, 128], strides = [1, 1]} : vector<8x512xf32> to vector<8x128xf32>
    %129 = arith.negf %128 : vector<8x128xf32>
    %130 = math.exp %129 : vector<8x128xf32>
    %cst_29 = arith.constant 1.000000e+00 : f32
    %131 = vector.broadcast %cst_29 : f32 to vector<8x128xf32>
    %132 = arith.addf %131, %130 : vector<8x128xf32>
    %133 = arith.divf %131, %132 : vector<8x128xf32>
    %134 = vector.extract_strided_slice %127 {offsets = [0, 128], sizes = [8, 128], strides = [1, 1]} : vector<8x512xf32> to vector<8x128xf32>
    %135 = arith.negf %134 : vector<8x128xf32>
    %136 = math.exp %135 : vector<8x128xf32>
    %cst_30 = arith.constant 1.000000e+00 : f32
    %137 = vector.broadcast %cst_30 : f32 to vector<8x128xf32>
    %138 = arith.addf %137, %136 : vector<8x128xf32>
    %139 = arith.divf %137, %138 : vector<8x128xf32>
    %140 = vector.extract_strided_slice %127 {offsets = [0, 256], sizes = [8, 128], strides = [1, 1]} : vector<8x512xf32> to vector<8x128xf32>
    %141 = math.tanh %140 : vector<8x128xf32>
    %142 = vector.extract_strided_slice %127 {offsets = [0, 384], sizes = [8, 128], strides = [1, 1]} : vector<8x512xf32> to vector<8x128xf32>
    %143 = arith.negf %142 : vector<8x128xf32>
    %144 = math.exp %143 : vector<8x128xf32>
    %cst_31 = arith.constant 1.000000e+00 : f32
    %145 = vector.broadcast %cst_31 : f32 to vector<8x128xf32>
    %146 = arith.addf %145, %144 : vector<8x128xf32>
    %147 = arith.divf %145, %146 : vector<8x128xf32>
    %148 = arith.mulf %139, %120 : vector<8x128xf32>
    %149 = arith.mulf %133, %141 : vector<8x128xf32>
    %150 = arith.addf %148, %149 : vector<8x128xf32>
    %151 = math.tanh %150 : vector<8x128xf32>
    %152 = arith.mulf %147, %151 : vector<8x128xf32>
    %c5_i32 = arith.constant 5 : i32
    %153 = arith.index_cast %c5_i32 : i32 to index
    %c0_32 = arith.constant 0 : index
    %c0_33 = arith.constant 0 : index
    %154 = vector.load %arg0[%153, %c0_32, %c0_33] : memref<8x8x512xf32, #tpu.memory_space<vmem>>, vector<1x8x512xf32>
    %155 = vector.shape_cast %154 : vector<1x8x512xf32> to vector<8x512xf32>
    %cst_34 = arith.constant dense<0.000000e+00> : vector<8x512xf32>
    %156 = tpu.matmul %152, %0, %cst_34 {dimension_numbers = #tpu.dot_dimension_numbers<[1], [0], [0], [1], [0, 0, 1, 1], [], []>} : vector<8x128xf32>, vector<128x512xf32>, vector<8x512xf32> -> vector<8x512xf32>
    %157 = arith.addf %155, %156 : vector<8x512xf32>
    %158 = vector.extract_strided_slice %157 {offsets = [0, 0], sizes = [8, 128], strides = [1, 1]} : vector<8x512xf32> to vector<8x128xf32>
    %159 = arith.negf %158 : vector<8x128xf32>
    %160 = math.exp %159 : vector<8x128xf32>
    %cst_35 = arith.constant 1.000000e+00 : f32
    %161 = vector.broadcast %cst_35 : f32 to vector<8x128xf32>
    %162 = arith.addf %161, %160 : vector<8x128xf32>
    %163 = arith.divf %161, %162 : vector<8x128xf32>
    %164 = vector.extract_strided_slice %157 {offsets = [0, 128], sizes = [8, 128], strides = [1, 1]} : vector<8x512xf32> to vector<8x128xf32>
    %165 = arith.negf %164 : vector<8x128xf32>
    %166 = math.exp %165 : vector<8x128xf32>
    %cst_36 = arith.constant 1.000000e+00 : f32
    %167 = vector.broadcast %cst_36 : f32 to vector<8x128xf32>
    %168 = arith.addf %167, %166 : vector<8x128xf32>
    %169 = arith.divf %167, %168 : vector<8x128xf32>
    %170 = vector.extract_strided_slice %157 {offsets = [0, 256], sizes = [8, 128], strides = [1, 1]} : vector<8x512xf32> to vector<8x128xf32>
    %171 = math.tanh %170 : vector<8x128xf32>
    %172 = vector.extract_strided_slice %157 {offsets = [0, 384], sizes = [8, 128], strides = [1, 1]} : vector<8x512xf32> to vector<8x128xf32>
    %173 = arith.negf %172 : vector<8x128xf32>
    %174 = math.exp %173 : vector<8x128xf32>
    %cst_37 = arith.constant 1.000000e+00 : f32
    %175 = vector.broadcast %cst_37 : f32 to vector<8x128xf32>
    %176 = arith.addf %175, %174 : vector<8x128xf32>
    %177 = arith.divf %175, %176 : vector<8x128xf32>
    %178 = arith.mulf %169, %150 : vector<8x128xf32>
    %179 = arith.mulf %163, %171 : vector<8x128xf32>
    %180 = arith.addf %178, %179 : vector<8x128xf32>
    %181 = math.tanh %180 : vector<8x128xf32>
    %182 = arith.mulf %177, %181 : vector<8x128xf32>
    %c6_i32 = arith.constant 6 : i32
    %183 = arith.index_cast %c6_i32 : i32 to index
    %c0_38 = arith.constant 0 : index
    %c0_39 = arith.constant 0 : index
    %184 = vector.load %arg0[%183, %c0_38, %c0_39] : memref<8x8x512xf32, #tpu.memory_space<vmem>>, vector<1x8x512xf32>
    %185 = vector.shape_cast %184 : vector<1x8x512xf32> to vector<8x512xf32>
    %cst_40 = arith.constant dense<0.000000e+00> : vector<8x512xf32>
    %186 = tpu.matmul %182, %0, %cst_40 {dimension_numbers = #tpu.dot_dimension_numbers<[1], [0], [0], [1], [0, 0, 1, 1], [], []>} : vector<8x128xf32>, vector<128x512xf32>, vector<8x512xf32> -> vector<8x512xf32>
    %187 = arith.addf %185, %186 : vector<8x512xf32>
    %188 = vector.extract_strided_slice %187 {offsets = [0, 0], sizes = [8, 128], strides = [1, 1]} : vector<8x512xf32> to vector<8x128xf32>
    %189 = arith.negf %188 : vector<8x128xf32>
    %190 = math.exp %189 : vector<8x128xf32>
    %cst_41 = arith.constant 1.000000e+00 : f32
    %191 = vector.broadcast %cst_41 : f32 to vector<8x128xf32>
    %192 = arith.addf %191, %190 : vector<8x128xf32>
    %193 = arith.divf %191, %192 : vector<8x128xf32>
    %194 = vector.extract_strided_slice %187 {offsets = [0, 128], sizes = [8, 128], strides = [1, 1]} : vector<8x512xf32> to vector<8x128xf32>
    %195 = arith.negf %194 : vector<8x128xf32>
    %196 = math.exp %195 : vector<8x128xf32>
    %cst_42 = arith.constant 1.000000e+00 : f32
    %197 = vector.broadcast %cst_42 : f32 to vector<8x128xf32>
    %198 = arith.addf %197, %196 : vector<8x128xf32>
    %199 = arith.divf %197, %198 : vector<8x128xf32>
    %200 = vector.extract_strided_slice %187 {offsets = [0, 256], sizes = [8, 128], strides = [1, 1]} : vector<8x512xf32> to vector<8x128xf32>
    %201 = math.tanh %200 : vector<8x128xf32>
    %202 = vector.extract_strided_slice %187 {offsets = [0, 384], sizes = [8, 128], strides = [1, 1]} : vector<8x512xf32> to vector<8x128xf32>
    %203 = arith.negf %202 : vector<8x128xf32>
    %204 = math.exp %203 : vector<8x128xf32>
    %cst_43 = arith.constant 1.000000e+00 : f32
    %205 = vector.broadcast %cst_43 : f32 to vector<8x128xf32>
    %206 = arith.addf %205, %204 : vector<8x128xf32>
    %207 = arith.divf %205, %206 : vector<8x128xf32>
    %208 = arith.mulf %199, %180 : vector<8x128xf32>
    %209 = arith.mulf %193, %201 : vector<8x128xf32>
    %210 = arith.addf %208, %209 : vector<8x128xf32>
    %211 = math.tanh %210 : vector<8x128xf32>
    %212 = arith.mulf %207, %211 : vector<8x128xf32>
    %c7_i32 = arith.constant 7 : i32
    %213 = arith.index_cast %c7_i32 : i32 to index
    %c0_44 = arith.constant 0 : index
    %c0_45 = arith.constant 0 : index
    %214 = vector.load %arg0[%213, %c0_44, %c0_45] : memref<8x8x512xf32, #tpu.memory_space<vmem>>, vector<1x8x512xf32>
    %215 = vector.shape_cast %214 : vector<1x8x512xf32> to vector<8x512xf32>
    %cst_46 = arith.constant dense<0.000000e+00> : vector<8x512xf32>
    %216 = tpu.matmul %212, %0, %cst_46 {dimension_numbers = #tpu.dot_dimension_numbers<[1], [0], [0], [1], [0, 0, 1, 1], [], []>} : vector<8x128xf32>, vector<128x512xf32>, vector<8x512xf32> -> vector<8x512xf32>
    %217 = arith.addf %215, %216 : vector<8x512xf32>
    %218 = vector.extract_strided_slice %217 {offsets = [0, 0], sizes = [8, 128], strides = [1, 1]} : vector<8x512xf32> to vector<8x128xf32>
    %219 = arith.negf %218 : vector<8x128xf32>
    %220 = math.exp %219 : vector<8x128xf32>
    %cst_47 = arith.constant 1.000000e+00 : f32
    %221 = vector.broadcast %cst_47 : f32 to vector<8x128xf32>
    %222 = arith.addf %221, %220 : vector<8x128xf32>
    %223 = arith.divf %221, %222 : vector<8x128xf32>
    %224 = vector.extract_strided_slice %217 {offsets = [0, 128], sizes = [8, 128], strides = [1, 1]} : vector<8x512xf32> to vector<8x128xf32>
    %225 = arith.negf %224 : vector<8x128xf32>
    %226 = math.exp %225 : vector<8x128xf32>
    %cst_48 = arith.constant 1.000000e+00 : f32
    %227 = vector.broadcast %cst_48 : f32 to vector<8x128xf32>
    %228 = arith.addf %227, %226 : vector<8x128xf32>
    %229 = arith.divf %227, %228 : vector<8x128xf32>
    %230 = vector.extract_strided_slice %217 {offsets = [0, 256], sizes = [8, 128], strides = [1, 1]} : vector<8x512xf32> to vector<8x128xf32>
    %231 = math.tanh %230 : vector<8x128xf32>
    %232 = vector.extract_strided_slice %217 {offsets = [0, 384], sizes = [8, 128], strides = [1, 1]} : vector<8x512xf32> to vector<8x128xf32>
    %233 = arith.negf %232 : vector<8x128xf32>
    %234 = math.exp %233 : vector<8x128xf32>
    %cst_49 = arith.constant 1.000000e+00 : f32
    %235 = vector.broadcast %cst_49 : f32 to vector<8x128xf32>
    %236 = arith.addf %235, %234 : vector<8x128xf32>
    %237 = arith.divf %235, %236 : vector<8x128xf32>
    %238 = arith.mulf %229, %210 : vector<8x128xf32>
    %239 = arith.mulf %223, %231 : vector<8x128xf32>
    %240 = arith.addf %238, %239 : vector<8x128xf32>
    %241 = math.tanh %240 : vector<8x128xf32>
    %242 = arith.mulf %237, %241 : vector<8x128xf32>
    %c8_i32 = arith.constant 8 : i32
    %c0_50 = arith.constant 0 : index
    %c0_51 = arith.constant 0 : index
    %243 = vector.load %arg2[%c0_50, %c0_51] : memref<128x64xf32, #tpu.memory_space<vmem>>, vector<128x64xf32>
    %cst_52 = arith.constant dense<0.000000e+00> : vector<8x64xf32>
    %244 = tpu.matmul %242, %243, %cst_52 {dimension_numbers = #tpu.dot_dimension_numbers<[1], [0], [0], [1], [0, 0, 1, 1], [], []>} : vector<8x128xf32>, vector<128x64xf32>, vector<8x64xf32> -> vector<8x64xf32>
    %c0_53 = arith.constant 0 : index
    %c0_54 = arith.constant 0 : index
    %245 = vector.load %arg3[%c0_53, %c0_54] : memref<1x64xf32, #tpu.memory_space<vmem>>, vector<1x64xf32>
    %246 = vector.broadcast %245 : vector<1x64xf32> to vector<8x64xf32>
    %247 = arith.addf %244, %246 : vector<8x64xf32>
    %cst_55 = arith.constant 0.000000e+00 : f32
    %248 = vector.broadcast %cst_55 : f32 to vector<8x64xf32>
    %249 = arith.maximumf %247, %248 : vector<8x64xf32>
    %c0_56 = arith.constant 0 : index
    %c0_57 = arith.constant 0 : index
    %250 = vector.load %arg4[%c0_56, %c0_57] : memref<64x21xf32, #tpu.memory_space<vmem>>, vector<64x21xf32>
    %cst_58 = arith.constant dense<0.000000e+00> : vector<8x21xf32>
    %251 = tpu.matmul %249, %250, %cst_58 {dimension_numbers = #tpu.dot_dimension_numbers<[1], [0], [0], [1], [0, 0, 1, 1], [], []>} : vector<8x64xf32>, vector<64x21xf32>, vector<8x21xf32> -> vector<8x21xf32>
    %c0_59 = arith.constant 0 : index
    %c0_60 = arith.constant 0 : index
    %252 = vector.load %arg5[%c0_59, %c0_60] : memref<1x21xf32, #tpu.memory_space<vmem>>, vector<1x21xf32>
    %253 = vector.broadcast %252 : vector<1x21xf32> to vector<8x21xf32>
    %254 = arith.addf %251, %253 : vector<8x21xf32>
    %cst_61 = arith.constant 0.000000e+00 : f32
    %255 = vector.broadcast %cst_61 : f32 to vector<8x21xf32>
    %256 = arith.maximumf %254, %255 : vector<8x21xf32>
    %c0_62 = arith.constant 0 : index
    %c0_63 = arith.constant 0 : index
    %257 = vector.load %arg6[%c0_62, %c0_63] : memref<8x21xf32, #tpu.memory_space<vmem>>, vector<8x21xf32>
    tpu.vector_store %arg6[%c0_62, %c0_63], %256 {strides = array<i32>} : memref<8x21xf32, #tpu.memory_space<vmem>>, vector<8x21xf32>,
    return
  }
}

</mosaic_0001>

<llo_original>
// kernel: tpu_custom_call.1
$region0: #{tpu_custom_call.1}
  #allocation0 [shape = 'u32[]', space=smem, size = 0x4, offset = 0x4, fixed_abs, tag = 'smem constant byte address 0x4 - core index']
  #allocation1 [shape = 'u32[72,128]{1,0:T(1,128)}', space=vmem, size = 0x9000, scoped, tag = 'internal scratch']
  %s0 = inlined_call_operand.hbm [shape: f32[8,8,512], index: 0, kind: input, shape index: {}]
  %s1 = inlined_call_operand.hbm [shape: f32[128,512], index: 1, kind: input, shape index: {}]
  %s2 = inlined_call_operand.vmem [shape: f32[128,64], index: 2, kind: input, shape index: {}]
  %s3 = inlined_call_operand.vmem [shape: f32[1,64], index: 3, kind: input, shape index: {}]
  %s4 = inlined_call_operand.vmem [shape: f32[64,21], index: 4, kind: input, shape index: {}]
  %s5 = inlined_call_operand.vmem [shape: f32[1,21], index: 5, kind: input, shape index: {}]
  %s6 = inlined_call_operand.hbm [shape: f32[8,21], index: 6, kind: output, shape index: {}]
  %s7 = sld [smem:[#allocation0]]
  $region42: #{tpu_custom_call.1} parent=0
    _
  %s9 = ssub.s32 1, %s7
  %s10 = scalar_select 0, %s9, %s7
  $region1: #{tpu_custom_call.1} parent=0
    #allocation2 [shape = 'u8[131072]{0}', space=vmem, size = 0x20000, scoped, tag = 'input window, operand 0, single buffered']
    #allocation3 [shape = 's32[1]{0}', space=sflag, size = 0x4, scoped, tag = 'scoped memory for tpu_custom_call.1']
    #allocation4 [shape = 's32[1]{0}', space=sflag, size = 0x4, scoped, tag = 'scoped memory for tpu_custom_call.1']
    #allocation5 [shape = 'u8[262144]{0}', space=vmem, size = 0x40000, scoped, tag = 'input window, operand 1, single buffered']
    #allocation6 [shape = 's32[1]{0}', space=sflag, size = 0x4, scoped, tag = 'scoped memory for tpu_custom_call.1']
    #allocation7 [shape = 'u8[4096]{0}', space=vmem, size = 0x1000, scoped, tag = 'output window, operand 0, single buffered']
    %11 = vsyncpa [#allocation3], 0
    %12 = vsyncpa [#allocation6], 0
    %13 = vsyncpa [#allocation4], 0
    // Predicated region
    $region2: #{tpu_custom_call.1} parent=1 // pred_check
      _
    $region3: #{tpu_custom_call.1} parent=1 // pred_check_branch
      %15 = sbr.rel (0) target = $region5
    $region4: #{tpu_custom_call.1} parent=1 // pred_region
      %17 = vsyncadd [#allocation3], 0
      %s18 = sshll.u32 %s0, 4
      %s19 = int_to_ptr.hbm [resolvable:$true] %s18
      %s20 = sshll.u32 [#allocation2], 4
      %s21 = int_to_ptr.vmem [resolvable:$true] %s20
      %26 = dma.hbm_to_vmem [thread:$0]  %s19, 4096, %s21, [#allocation3], 512, 512, 32
    $region5: #{tpu_custom_call.1} parent=1 // pred_fallthru
      _
    // Predicated region
    $region6: #{tpu_custom_call.1} parent=1 // pred_check
      _
    $region7: #{tpu_custom_call.1} parent=1 // pred_check_branch
      %28 = sbr.rel (0) target = $region9
    $region8: #{tpu_custom_call.1} parent=1 // pred_region
      %30 = vsyncadd [#allocation6], 0
      %s31 = sshll.u32 %s1, 4
      %s32 = int_to_ptr.hbm [resolvable:$true] %s31
      %s33 = sshll.u32 [#allocation5], 4
      %s34 = int_to_ptr.vmem [resolvable:$true] %s33
      %39 = dma.hbm_to_vmem [thread:$0]  %s32, 8192, %s34, [#allocation6], 512, 512, 32
    $region9: #{tpu_custom_call.1} parent=1 // pred_fallthru
      _
    // Predicated region
    $region10: #{tpu_custom_call.1} parent=1 // pred_check
      _
    $region11: #{tpu_custom_call.1} parent=1 // pred_check_branch
      %41 = sbr.rel (0) target = $region13
    $region12: #{tpu_custom_call.1} parent=1 // pred_region
      _
    $region13: #{tpu_custom_call.1} parent=1 // pred_fallthru
      _
    // Predicated region
    $region14: #{tpu_custom_call.1} parent=1 // pred_check
      _
    $region15: #{tpu_custom_call.1} parent=1 // pred_check_branch
      %43 = sbr.rel (0) target = $region17
    $region16: #{tpu_custom_call.1} parent=1 // pred_region
      _
    $region17: #{tpu_custom_call.1} parent=1 // pred_fallthru
      _
    // Predicated region
    $region18: #{tpu_custom_call.1} parent=1 // pred_check
      _
    $region19: #{tpu_custom_call.1} parent=1 // pred_check_branch
      %45 = sbr.rel (0) target = $region21
    $region20: #{tpu_custom_call.1} parent=1 // pred_region
      _
    $region21: #{tpu_custom_call.1} parent=1 // pred_fallthru
      _
    // Predicated region
    $region22: #{tpu_custom_call.1} parent=1 // pred_check
      _
    $region23: #{tpu_custom_call.1} parent=1 // pred_check_branch
      %47 = sbr.rel (0) target = $region25
    $region24: #{tpu_custom_call.1} parent=1 // pred_region
      _
    $region25: #{tpu_custom_call.1} parent=1 // pred_fallthru
      _
    // Predicated region
    $region26: #{tpu_custom_call.1} parent=1 // pred_check
      _
    $region27: #{tpu_custom_call.1} parent=1 // pred_check_branch
      %49 = sbr.rel (0) target = $region29
    $region28: #{tpu_custom_call.1} parent=1 // pred_region
      %51 = dma.done [#allocation3], 4096
    $region29: #{tpu_custom_call.1} parent=1 // pred_fallthru
      _
    // Predicated region
    $region30: #{tpu_custom_call.1} parent=1 // pred_check
      _
    $region31: #{tpu_custom_call.1} parent=1 // pred_check_branch
      %53 = sbr.rel (0) target = $region33
    $region32: #{tpu_custom_call.1} parent=1 // pred_region
      %55 = dma.done [#allocation6], 8192
    $region33: #{tpu_custom_call.1} parent=1 // pred_fallthru
      _
    %v56 = vld [vmem:[#allocation5] sm:$0xff]
    %v57 = vld [vmem:[#allocation5 + $0x8] sm:$0xff]
    %v58 = vld [vmem:[#allocation5 + $0x10] sm:$0xff]
    %v59 = vld [vmem:[#allocation5 + $0x18] sm:$0xff]
    %v60 = vld [vmem:[#allocation5 + $0x20] sm:$0xff]
    %v61 = vld [vmem:[#allocation5 + $0x28] sm:$0xff]
    %v62 = vld [vmem:[#allocation5 + $0x30] sm:$0xff]
    %v63 = vld [vmem:[#allocation5 + $0x38] sm:$0xff]
    %v64 = vld [vmem:[#allocation5 + $0x40] sm:$0xff]
    %v65 = vld [vmem:[#allocation5 + $0x48] sm:$0xff]
    %v66 = vld [vmem:[#allocation5 + $0x50] sm:$0xff]
    %v67 = vld [vmem:[#allocation5 + $0x58] sm:$0xff]
    %v68 = vld [vmem:[#allocation5 + $0x60] sm:$0xff]
    %v69 = vld [vmem:[#allocation5 + $0x68] sm:$0xff]
    %v70 = vld [vmem:[#allocation5 + $0x70] sm:$0xff]
    %v71 = vld [vmem:[#allocation5 + $0x78] sm:$0xff]
    %v72 = vld [vmem:[#allocation5 + $0x80] sm:$0xff]
    %v73 = vld [vmem:[#allocation5 + $0x88] sm:$0xff]
    %v74 = vld [vmem:[#allocation5 + $0x90] sm:$0xff]
    %v75 = vld [vmem:[#allocation5 + $0x98] sm:$0xff]
    %v76 = vld [vmem:[#allocation5 + $0xa0] sm:$0xff]
    %v77 = vld [vmem:[#allocation5 + $0xa8] sm:$0xff]
    %v78 = vld [vmem:[#allocation5 + $0xb0] sm:$0xff]
    %v79 = vld [vmem:[#allocation5 + $0xb8] sm:$0xff]
    %v80 = vld [vmem:[#allocation5 + $0xc0] sm:$0xff]
    %v81 = vld [vmem:[#allocation5 + $0xc8] sm:$0xff]
    %v82 = vld [vmem:[#allocation5 + $0xd0] sm:$0xff]
    %v83 = vld [vmem:[#allocation5 + $0xd8] sm:$0xff]
    %v84 = vld [vmem:[#allocation5 + $0xe0] sm:$0xff]
    %v85 = vld [vmem:[#allocation5 + $0xe8] sm:$0xff]
    %v86 = vld [vmem:[#allocation5 + $0xf0] sm:$0xff]
    %v87 = vld [vmem:[#allocation5 + $0xf8] sm:$0xff]
    %v88 = vld [vmem:[#allocation5 + $0x100] sm:$0xff]
    %v89 = vld [vmem:[#allocation5 + $0x108] sm:$0xff]
    %v90 = vld [vmem:[#allocation5 + $0x110] sm:$0xff]
    %v91 = vld [vmem:[#allocation5 + $0x118] sm:$0xff]
    %v92 = vld [vmem:[#allocation5 + $0x120] sm:$0xff]
    %v93 = vld [vmem:[#allocation5 + $0x128] sm:$0xff]
    %v94 = vld [vmem:[#allocation5 + $0x130] sm:$0xff]
    %v95 = vld [vmem:[#allocation5 + $0x138] sm:$0xff]
    %v96 = vld [vmem:[#allocation5 + $0x140] sm:$0xff]
    %v97 = vld [vmem:[#allocation5 + $0x148] sm:$0xff]
    %v98 = vld [vmem:[#allocation5 + $0x150] sm:$0xff]
    %v99 = vld [vmem:[#allocation5 + $0x158] sm:$0xff]
    %v100 = vld [vmem:[#allocation5 + $0x160] sm:$0xff]
    %v101 = vld [vmem:[#allocation5 + $0x168] sm:$0xff]
    %v102 = vld [vmem:[#allocation5 + $0x170] sm:$0xff]
    %v103 = vld [vmem:[#allocation5 + $0x178] sm:$0xff]
    %v104 = vld [vmem:[#allocation5 + $0x180] sm:$0xff]
    %v105 = vld [vmem:[#allocation5 + $0x188] sm:$0xff]
    %v106 = vld [vmem:[#allocation5 + $0x190] sm:$0xff]
    %v107 = vld [vmem:[#allocation5 + $0x198] sm:$0xff]
    %v108 = vld [vmem:[#allocation5 + $0x1a0] sm:$0xff]
    %v109 = vld [vmem:[#allocation5 + $0x1a8] sm:$0xff]
    %v110 = vld [vmem:[#allocation5 + $0x1b0] sm:$0xff]
    %v111 = vld [vmem:[#allocation5 + $0x1b8] sm:$0xff]
    %v112 = vld [vmem:[#allocation5 + $0x1c0] sm:$0xff]
    %v113 = vld [vmem:[#allocation5 + $0x1c8] sm:$0xff]
    %v114 = vld [vmem:[#allocation5 + $0x1d0] sm:$0xff]
    %v115 = vld [vmem:[#allocation5 + $0x1d8] sm:$0xff]
    %v116 = vld [vmem:[#allocation5 + $0x1e0] sm:$0xff]
    %v117 = vld [vmem:[#allocation5 + $0x1e8] sm:$0xff]
    %v118 = vld [vmem:[#allocation5 + $0x1f0] sm:$0xff]
    %v119 = vld [vmem:[#allocation5 + $0x1f8] sm:$0xff]
    %v120 = vld [vmem:[#allocation2] sm:$0xff]
    %v121 = vld [vmem:[#allocation2 + $0x8] sm:$0xff]
    %v122 = vld [vmem:[#allocation2 + $0x10] sm:$0xff]
    %v123 = vld [vmem:[#allocation2 + $0x18] sm:$0xff]
    %124 = vmatpush.msra.mxu0 %v116
    %125 = vmatpush.msra.mxu0 %v112
    %126 = vmatpush.msra.mxu0 %v108
    %127 = vmatpush.msra.mxu0 %v104
    %128 = vmatpush.msra.mxu0 %v100
    %129 = vmatpush.msra.mxu0 %v96
    %130 = vmatpush.msra.mxu0 %v92
    %131 = vmatpush.msra.mxu0 %v88
    %132 = vmatpush.msra.mxu0 %v84
    %133 = vmatpush.msra.mxu0 %v80
    %134 = vmatpush.msra.mxu0 %v76
    %135 = vmatpush.msra.mxu0 %v72
    %136 = vmatpush.msra.mxu0 %v68
    %137 = vmatpush.msra.mxu0 %v64
    %138 = vmatpush.msra.mxu0 %v60
    %139 = vmatpush.msra.mxu0 %v56
    %140 = vmatmul.f32.gmra.mxu0 0.0
    %v141 = vpop.f32.mrf.mxu0
    %v142 = vadd.f32 0.0, %v141
    %143 = vdwg.mxu0
    %144 = vmatpush.msra.mxu0 %v117
    %145 = vmatpush.msra.mxu0 %v113
    %146 = vmatpush.msra.mxu0 %v109
    %147 = vmatpush.msra.mxu0 %v105
    %148 = vmatpush.msra.mxu0 %v101
    %149 = vmatpush.msra.mxu0 %v97
    %150 = vmatpush.msra.mxu0 %v93
    %151 = vmatpush.msra.mxu0 %v89
    %152 = vmatpush.msra.mxu0 %v85
    %153 = vmatpush.msra.mxu0 %v81
    %154 = vmatpush.msra.mxu0 %v77
    %155 = vmatpush.msra.mxu0 %v73
    %156 = vmatpush.msra.mxu0 %v69
    %157 = vmatpush.msra.mxu0 %v65
    %158 = vmatpush.msra.mxu0 %v61
    %159 = vmatpush.msra.mxu0 %v57
    %160 = vmatmul.f32.gmra.mxu0 0.0
    %v161 = vpop.f32.mrf.mxu0
    %v162 = vadd.f32 0.0, %v161
    %163 = vdwg.mxu0
    %164 = vmatpush.msra.mxu0 %v118
    %165 = vmatpush.msra.mxu0 %v114
    %166 = vmatpush.msra.mxu0 %v110
    %167 = vmatpush.msra.mxu0 %v106
    %168 = vmatpush.msra.mxu0 %v102
    %169 = vmatpush.msra.mxu0 %v98
    %170 = vmatpush.msra.mxu0 %v94
    %171 = vmatpush.msra.mxu0 %v90
    %172 = vmatpush.msra.mxu0 %v86
    %173 = vmatpush.msra.mxu0 %v82
    %174 = vmatpush.msra.mxu0 %v78
    %175 = vmatpush.msra.mxu0 %v74
    %176 = vmatpush.msra.mxu0 %v70
    %177 = vmatpush.msra.mxu0 %v66
    %178 = vmatpush.msra.mxu0 %v62
    %179 = vmatpush.msra.mxu0 %v58
    %180 = vmatmul.f32.gmra.mxu0 0.0
    %v181 = vpop.f32.mrf.mxu0
    %v182 = vadd.f32 0.0, %v181
    %183 = vdwg.mxu0
    %184 = vmatpush.msra.mxu0 %v119
    %185 = vmatpush.msra.mxu0 %v115
    %186 = vmatpush.msra.mxu0 %v111
    %187 = vmatpush.msra.mxu0 %v107
    %188 = vmatpush.msra.mxu0 %v103
    %189 = vmatpush.msra.mxu0 %v99
    %190 = vmatpush.msra.mxu0 %v95
    %191 = vmatpush.msra.mxu0 %v91
    %192 = vmatpush.msra.mxu0 %v87
    %193 = vmatpush.msra.mxu0 %v83
    %194 = vmatpush.msra.mxu0 %v79
    %195 = vmatpush.msra.mxu0 %v75
    %196 = vmatpush.msra.mxu0 %v71
    %197 = vmatpush.msra.mxu0 %v67
    %198 = vmatpush.msra.mxu0 %v63
    %199 = vmatpush.msra.mxu0 %v59
    %200 = vmatmul.f32.gmra.mxu0 0.0
    %v201 = vpop.f32.mrf.mxu0
    %v202 = vadd.f32 0.0, %v201
    %203 = vdwg.mxu0
    %v204 = vadd.f32 %v120, %v142
    %v205 = vadd.f32 %v121, %v162
    %v206 = vadd.f32 %v122, %v182
    %v207 = vadd.f32 %v123, %v202
    %v208 = vxor.u32 %v204, 2147483648
    %v209 = vmul.f32 %v208, 1.442695
    %v210 = vpow.pop %v209
    %v211 = vadd.f32 %v210, 1.0
    %v212 = vrcp.pop %v211
    %v213 = vmul.f32 %v211, %v212
    %v214 = vsub.f32 1.0, %v213
    %v215 = vmul.f32 %v212, %v214
    %v216 = vadd.f32 %v212, %v215
    %vm217 = vweird.f32 %v211
    %vm218 = vweird.f32 %v212
    %vm219 = vmor %vm217, %vm218
    %v220 = vsel %vm219, %v212, %v216
    %v221 = vand.u32 2147483647, %v211
    %vm222 = vcmp.eq.f32.partialorder %v221, 8.507059e+37
    %v223 = vand.u32 %v211, 2147483648
    %v224 = vor.u32 1.1754944e-38, %v223
    %v225 = vsel %vm222, %v224, %v220
    %v226 = vmul.f32 1.0, %v225
    %v227 = vxor.u32 %v205, 2147483648
    %v228 = vmul.f32 %v227, 1.442695
    %v229 = vpow.pop %v228
    %v230 = vadd.f32 %v229, 1.0
    %v231 = vrcp.pop %v230
    %v232 = vmul.f32 %v230, %v231
    %v233 = vsub.f32 1.0, %v232
    %v234 = vmul.f32 %v231, %v233
    %v235 = vadd.f32 %v231, %v234
    %vm236 = vweird.f32 %v230
    %vm237 = vweird.f32 %v231
    %vm238 = vmor %vm236, %vm237
    %v239 = vsel %vm238, %v231, %v235
    %v240 = vand.u32 2147483647, %v230
    %vm241 = vcmp.eq.f32.partialorder %v240, 8.507059e+37
    %v242 = vand.u32 %v230, 2147483648
    %v243 = vor.u32 1.1754944e-38, %v242
    %v244 = vsel %vm241, %v243, %v239
    %v245 = vmul.f32 1.0, %v244
    %v246 = vtanh.pop %v206
    %v247 = vxor.u32 %v207, 2147483648
    %v248 = vmul.f32 %v247, 1.442695
    %v249 = vpow.pop %v248
    %v250 = vadd.f32 %v249, 1.0
    %v251 = vrcp.pop %v250
    %v252 = vmul.f32 %v250, %v251
    %v253 = vsub.f32 1.0, %v252
    %v254 = vmul.f32 %v251, %v253
    %v255 = vadd.f32 %v251, %v254
    %vm256 = vweird.f32 %v250
    %vm257 = vweird.f32 %v251
    %vm258 = vmor %vm256, %vm257
    %v259 = vsel %vm258, %v251, %v255
    %v260 = vand.u32 2147483647, %v250
    %vm261 = vcmp.eq.f32.partialorder %v260, 8.507059e+37
    %v262 = vand.u32 %v250, 2147483648
    %v263 = vor.u32 1.1754944e-38, %v262
    %v264 = vsel %vm261, %v263, %v259
    %v265 = vmul.f32 1.0, %v264
    %v266 = vmul.f32 %v245, 0.0
    %v267 = vmul.f32 %v226, %v246
    %v268 = vadd.f32 %v266, %v267
    %v269 = vtanh.pop %v268
    %v270 = vmul.f32 %v265, %v269
    %s271 = scalar_lea.vmem [#allocation2], 32
    %v272 = vld [vmem:[%s271] sm:$0xff]
    %v273 = vld [vmem:[%s271 + $0x8] sm:$0xff]
    %v274 = vld [vmem:[%s271 + $0x10] sm:$0xff]
    %v275 = vld [vmem:[%s271 + $0x18] sm:$0xff]
    %276 = vmatpush.msra.mxu0 %v116
    %277 = vmatpush.msra.mxu0 %v112
    %278 = vmatpush.msra.mxu0 %v108
    %279 = vmatpush.msra.mxu0 %v104
    %280 = vmatpush.msra.mxu0 %v100
    %281 = vmatpush.msra.mxu0 %v96
    %282 = vmatpush.msra.mxu0 %v92
    %283 = vmatpush.msra.mxu0 %v88
    %284 = vmatpush.msra.mxu0 %v84
    %285 = vmatpush.msra.mxu0 %v80
    %286 = vmatpush.msra.mxu0 %v76
    %287 = vmatpush.msra.mxu0 %v72
    %288 = vmatpush.msra.mxu0 %v68
    %289 = vmatpush.msra.mxu0 %v64
    %290 = vmatpush.msra.mxu0 %v60
    %291 = vmatpush.msra.mxu0 %v56
    %292 = vmatmul.f32.gmra.mxu0 %v270
    %v293 = vpop.f32.mrf.mxu0
    %v294 = vadd.f32 0.0, %v293
    %295 = vdwg.mxu0
    %296 = vmatpush.msra.mxu0 %v117
    %297 = vmatpush.msra.mxu0 %v113
    %298 = vmatpush.msra.mxu0 %v109
    %299 = vmatpush.msra.mxu0 %v105
    %300 = vmatpush.msra.mxu0 %v101
    %301 = vmatpush.msra.mxu0 %v97
    %302 = vmatpush.msra.mxu0 %v93
    %303 = vmatpush.msra.mxu0 %v89
    %304 = vmatpush.msra.mxu0 %v85
    %305 = vmatpush.msra.mxu0 %v81
    %306 = vmatpush.msra.mxu0 %v77
    %307 = vmatpush.msra.mxu0 %v73
    %308 = vmatpush.msra.mxu0 %v69
    %309 = vmatpush.msra.mxu0 %v65
    %310 = vmatpush.msra.mxu0 %v61
    %311 = vmatpush.msra.mxu0 %v57
    %312 = vmatmul.f32.gmra.mxu0 %v270
    %v313 = vpop.f32.mrf.mxu0
    %v314 = vadd.f32 0.0, %v313
    %315 = vdwg.mxu0
    %316 = vmatpush.msra.mxu0 %v118
    %317 = vmatpush.msra.mxu0 %v114
    %318 = vmatpush.msra.mxu0 %v110
    %319 = vmatpush.msra.mxu0 %v106
    %320 = vmatpush.msra.mxu0 %v102
    %321 = vmatpush.msra.mxu0 %v98
    %322 = vmatpush.msra.mxu0 %v94
    %323 = vmatpush.msra.mxu0 %v90
    %324 = vmatpush.msra.mxu0 %v86
    %325 = vmatpush.msra.mxu0 %v82
    %326 = vmatpush.msra.mxu0 %v78
    %327 = vmatpush.msra.mxu0 %v74
    %328 = vmatpush.msra.mxu0 %v70
    %329 = vmatpush.msra.mxu0 %v66
    %330 = vmatpush.msra.mxu0 %v62
    %331 = vmatpush.msra.mxu0 %v58
    %332 = vmatmul.f32.gmra.mxu0 %v270
    %v333 = vpop.f32.mrf.mxu0
    %v334 = vadd.f32 0.0, %v333
    %335 = vdwg.mxu0
    %336 = vmatpush.msra.mxu0 %v119
    %337 = vmatpush.msra.mxu0 %v115
    %338 = vmatpush.msra.mxu0 %v111
    %339 = vmatpush.msra.mxu0 %v107
    %340 = vmatpush.msra.mxu0 %v103
    %341 = vmatpush.msra.mxu0 %v99
    %342 = vmatpush.msra.mxu0 %v95
    %343 = vmatpush.msra.mxu0 %v91
    %344 = vmatpush.msra.mxu0 %v87
    %345 = vmatpush.msra.mxu0 %v83
    %346 = vmatpush.msra.mxu0 %v79
    %347 = vmatpush.msra.mxu0 %v75
    %348 = vmatpush.msra.mxu0 %v71
    %349 = vmatpush.msra.mxu0 %v67
    %350 = vmatpush.msra.mxu0 %v63
    %351 = vmatpush.msra.mxu0 %v59
    %352 = vmatmul.f32.gmra.mxu0 %v270
    %v353 = vpop.f32.mrf.mxu0
    %v354 = vadd.f32 0.0, %v353
    %355 = vdwg.mxu0
    %v356 = vadd.f32 %v272, %v294
    %v357 = vadd.f32 %v273, %v314
    %v358 = vadd.f32 %v274, %v334
    %v359 = vadd.f32 %v275, %v354
    %v360 = vxor.u32 %v356, 2147483648
    %v361 = vmul.f32 %v360, 1.442695
    %v362 = vpow.pop %v361
    %v363 = vadd.f32 %v362, 1.0
    %v364 = vrcp.pop %v363
    %v365 = vmul.f32 %v363, %v364
    %v366 = vsub.f32 1.0, %v365
    %v367 = vmul.f32 %v364, %v366
    %v368 = vadd.f32 %v364, %v367
    %vm369 = vweird.f32 %v363
    %vm370 = vweird.f32 %v364
    %vm371 = vmor %vm369, %vm370
    %v372 = vsel %vm371, %v364, %v368
    %v373 = vand.u32 2147483647, %v363
    %vm374 = vcmp.eq.f32.partialorder %v373, 8.507059e+37
    %v375 = vand.u32 %v363, 2147483648
    %v376 = vor.u32 1.1754944e-38, %v375
    %v377 = vsel %vm374, %v376, %v372
    %v378 = vmul.f32 1.0, %v377
    %v379 = vxor.u32 %v357, 2147483648
    %v380 = vmul.f32 %v379, 1.442695
    %v381 = vpow.pop %v380
    %v382 = vadd.f32 %v381, 1.0
    %v383 = vrcp.pop %v382
    %v384 = vmul.f32 %v382, %v383
    %v385 = vsub.f32 1.0, %v384
    %v386 = vmul.f32 %v383, %v385
    %v387 = vadd.f32 %v383, %v386
    %vm388 = vweird.f32 %v382
    %vm389 = vweird.f32 %v383
    %vm390 = vmor %vm388, %vm389
    %v391 = vsel %vm390, %v383, %v387
    %v392 = vand.u32 2147483647, %v382
    %vm393 = vcmp.eq.f32.partialorder %v392, 8.507059e+37
    %v394 = vand.u32 %v382, 2147483648
    %v395 = vor.u32 1.1754944e-38, %v394
    %v396 = vsel %vm393, %v395, %v391
    %v397 = vmul.f32 1.0, %v396
    %v398 = vtanh.pop %v358
    %v399 = vxor.u32 %v359, 2147483648
    %v400 = vmul.f32 %v399, 1.442695
    %v401 = vpow.pop %v400
    %v402 = vadd.f32 %v401, 1.0
    %v403 = vrcp.pop %v402
    %v404 = vmul.f32 %v402, %v403
    %v405 = vsub.f32 1.0, %v404
    %v406 = vmul.f32 %v403, %v405
    %v407 = vadd.f32 %v403, %v406
    %vm408 = vweird.f32 %v402
    %vm409 = vweird.f32 %v403
    %vm410 = vmor %vm408, %vm409
    %v411 = vsel %vm410, %v403, %v407
    %v412 = vand.u32 2147483647, %v402
    %vm413 = vcmp.eq.f32.partialorder %v412, 8.507059e+37
    %v414 = vand.u32 %v402, 2147483648
    %v415 = vor.u32 1.1754944e-38, %v414
    %v416 = vsel %vm413, %v415, %v411
    %v417 = vmul.f32 1.0, %v416
    %v418 = vmul.f32 %v397, %v268
    %v419 = vmul.f32 %v378, %v398
    %v420 = vadd.f32 %v418, %v419
    %v421 = vtanh.pop %v420
    %v422 = vmul.f32 %v417, %v421
    %s423 = scalar_lea.vmem [#allocation2], 64
    %v424 = vld [vmem:[%s423] sm:$0xff]
    %v425 = vld [vmem:[%s423 + $0x8] sm:$0xff]
    %v426 = vld [vmem:[%s423 + $0x10] sm:$0xff]
    %v427 = vld [vmem:[%s423 + $0x18] sm:$0xff]
    %428 = vmatpush.msra.mxu0 %v116
    %429 = vmatpush.msra.mxu0 %v112
    %430 = vmatpush.msra.mxu0 %v108
    %431 = vmatpush.msra.mxu0 %v104
    %432 = vmatpush.msra.mxu0 %v100
    %433 = vmatpush.msra.mxu0 %v96
    %434 = vmatpush.msra.mxu0 %v92
    %435 = vmatpush.msra.mxu0 %v88
    %436 = vmatpush.msra.mxu0 %v84
    %437 = vmatpush.msra.mxu0 %v80
    %438 = vmatpush.msra.mxu0 %v76
    %439 = vmatpush.msra.mxu0 %v72
    %440 = vmatpush.msra.mxu0 %v68
    %441 = vmatpush.msra.mxu0 %v64
    %442 = vmatpush.msra.mxu0 %v60
    %443 = vmatpush.msra.mxu0 %v56
    %444 = vmatmul.f32.gmra.mxu0 %v422
    %v445 = vpop.f32.mrf.mxu0
    %v446 = vadd.f32 0.0, %v445
    %447 = vdwg.mxu0
    %448 = vmatpush.msra.mxu0 %v117
    %449 = vmatpush.msra.mxu0 %v113
    %450 = vmatpush.msra.mxu0 %v109
    %451 = vmatpush.msra.mxu0 %v105
    %452 = vmatpush.msra.mxu0 %v101
    %453 = vmatpush.msra.mxu0 %v97
    %454 = vmatpush.msra.mxu0 %v93
    %455 = vmatpush.msra.mxu0 %v89
    %456 = vmatpush.msra.mxu0 %v85
    %457 = vmatpush.msra.mxu0 %v81
    %458 = vmatpush.msra.mxu0 %v77
    %459 = vmatpush.msra.mxu0 %v73
    %460 = vmatpush.msra.mxu0 %v69
    %461 = vmatpush.msra.mxu0 %v65
    %462 = vmatpush.msra.mxu0 %v61
    %463 = vmatpush.msra.mxu0 %v57
    %464 = vmatmul.f32.gmra.mxu0 %v422
    %v465 = vpop.f32.mrf.mxu0
    %v466 = vadd.f32 0.0, %v465
    %467 = vdwg.mxu0
    %468 = vmatpush.msra.mxu0 %v118
    %469 = vmatpush.msra.mxu0 %v114
    %470 = vmatpush.msra.mxu0 %v110
    %471 = vmatpush.msra.mxu0 %v106
    %472 = vmatpush.msra.mxu0 %v102
    %473 = vmatpush.msra.mxu0 %v98
    %474 = vmatpush.msra.mxu0 %v94
    %475 = vmatpush.msra.mxu0 %v90
    %476 = vmatpush.msra.mxu0 %v86
    %477 = vmatpush.msra.mxu0 %v82
    %478 = vmatpush.msra.mxu0 %v78
    %479 = vmatpush.msra.mxu0 %v74
    %480 = vmatpush.msra.mxu0 %v70
    %481 = vmatpush.msra.mxu0 %v66
    %482 = vmatpush.msra.mxu0 %v62
    %483 = vmatpush.msra.mxu0 %v58
    %484 = vmatmul.f32.gmra.mxu0 %v422
    %v485 = vpop.f32.mrf.mxu0
    %v486 = vadd.f32 0.0, %v485
    %487 = vdwg.mxu0
    %488 = vmatpush.msra.mxu0 %v119
    %489 = vmatpush.msra.mxu0 %v115
    %490 = vmatpush.msra.mxu0 %v111
    %491 = vmatpush.msra.mxu0 %v107
    %492 = vmatpush.msra.mxu0 %v103
    %493 = vmatpush.msra.mxu0 %v99
    %494 = vmatpush.msra.mxu0 %v95
    %495 = vmatpush.msra.mxu0 %v91
    %496 = vmatpush.msra.mxu0 %v87
    %497 = vmatpush.msra.mxu0 %v83
    %498 = vmatpush.msra.mxu0 %v79
    %499 = vmatpush.msra.mxu0 %v75
    %500 = vmatpush.msra.mxu0 %v71
    %501 = vmatpush.msra.mxu0 %v67
    %502 = vmatpush.msra.mxu0 %v63
    %503 = vmatpush.msra.mxu0 %v59
    %504 = vmatmul.f32.gmra.mxu0 %v422
    %v505 = vpop.f32.mrf.mxu0
    %v506 = vadd.f32 0.0, %v505
    %507 = vdwg.mxu0
    %v508 = vadd.f32 %v424, %v446
    %v509 = vadd.f32 %v425, %v466
    %v510 = vadd.f32 %v426, %v486
    %v511 = vadd.f32 %v427, %v506
    %v512 = vxor.u32 %v508, 2147483648
    %v513 = vmul.f32 %v512, 1.442695
    %v514 = vpow.pop %v513
    %v515 = vadd.f32 %v514, 1.0
    %v516 = vrcp.pop %v515
    %v517 = vmul.f32 %v515, %v516
    %v518 = vsub.f32 1.0, %v517
    %v519 = vmul.f32 %v516, %v518
    %v520 = vadd.f32 %v516, %v519
    %vm521 = vweird.f32 %v515
    %vm522 = vweird.f32 %v516
    %vm523 = vmor %vm521, %vm522
    %v524 = vsel %vm523, %v516, %v520
    %v525 = vand.u32 2147483647, %v515
    %vm526 = vcmp.eq.f32.partialorder %v525, 8.507059e+37
    %v527 = vand.u32 %v515, 2147483648
    %v528 = vor.u32 1.1754944e-38, %v527
    %v529 = vsel %vm526, %v528, %v524
    %v530 = vmul.f32 1.0, %v529
    %v531 = vxor.u32 %v509, 2147483648
    %v532 = vmul.f32 %v531, 1.442695
    %v533 = vpow.pop %v532
    %v534 = vadd.f32 %v533, 1.0
    %v535 = vrcp.pop %v534
    %v536 = vmul.f32 %v534, %v535
    %v537 = vsub.f32 1.0, %v536
    %v538 = vmul.f32 %v535, %v537
    %v539 = vadd.f32 %v535, %v538
    %vm540 = vweird.f32 %v534
    %vm541 = vweird.f32 %v535
    %vm542 = vmor %vm540, %vm541
    %v543 = vsel %vm542, %v535, %v539
    %v544 = vand.u32 2147483647, %v534
    %vm545 = vcmp.eq.f32.partialorder %v544, 8.507059e+37
    %v546 = vand.u32 %v534, 2147483648
    %v547 = vor.u32 1.1754944e-38, %v546
    %v548 = vsel %vm545, %v547, %v543
    %v549 = vmul.f32 1.0, %v548
    %v550 = vtanh.pop %v510
    %v551 = vxor.u32 %v511, 2147483648
    %v552 = vmul.f32 %v551, 1.442695
    %v553 = vpow.pop %v552
    %v554 = vadd.f32 %v553, 1.0
    %v555 = vrcp.pop %v554
    %v556 = vmul.f32 %v554, %v555
    %v557 = vsub.f32 1.0, %v556
    %v558 = vmul.f32 %v555, %v557
    %v559 = vadd.f32 %v555, %v558
    %vm560 = vweird.f32 %v554
    %vm561 = vweird.f32 %v555
    %vm562 = vmor %vm560, %vm561
    %v563 = vsel %vm562, %v555, %v559
    %v564 = vand.u32 2147483647, %v554
    %vm565 = vcmp.eq.f32.partialorder %v564, 8.507059e+37
    %v566 = vand.u32 %v554, 2147483648
    %v567 = vor.u32 1.1754944e-38, %v566
    %v568 = vsel %vm565, %v567, %v563
    %v569 = vmul.f32 1.0, %v568
    %v570 = vmul.f32 %v549, %v420
    %v571 = vmul.f32 %v530, %v550
    %v572 = vadd.f32 %v570, %v571
    %v573 = vtanh.pop %v572
    %v574 = vmul.f32 %v569, %v573
    %s575 = scalar_lea.vmem [#allocation2], 96
    %v576 = vld [vmem:[%s575] sm:$0xff]
    %v577 = vld [vmem:[%s575 + $0x8] sm:$0xff]
    %v578 = vld [vmem:[%s575 + $0x10] sm:$0xff]
    %v579 = vld [vmem:[%s575 + $0x18] sm:$0xff]
    %580 = vmatpush.msra.mxu0 %v116
    %581 = vmatpush.msra.mxu0 %v112
    %582 = vmatpush.msra.mxu0 %v108
    %583 = vmatpush.msra.mxu0 %v104
    %584 = vmatpush.msra.mxu0 %v100
    %585 = vmatpush.msra.mxu0 %v96
    %586 = vmatpush.msra.mxu0 %v92
    %587 = vmatpush.msra.mxu0 %v88
    %588 = vmatpush.msra.mxu0 %v84
    %589 = vmatpush.msra.mxu0 %v80
    %590 = vmatpush.msra.mxu0 %v76
    %591 = vmatpush.msra.mxu0 %v72
    %592 = vmatpush.msra.mxu0 %v68
    %593 = vmatpush.msra.mxu0 %v64
    %594 = vmatpush.msra.mxu0 %v60
    %595 = vmatpush.msra.mxu0 %v56
    %596 = vmatmul.f32.gmra.mxu0 %v574
    %v597 = vpop.f32.mrf.mxu0
    %v598 = vadd.f32 0.0, %v597
    %599 = vdwg.mxu0
    %600 = vmatpush.msra.mxu0 %v117
    %601 = vmatpush.msra.mxu0 %v113
    %602 = vmatpush.msra.mxu0 %v109
    %603 = vmatpush.msra.mxu0 %v105
    %604 = vmatpush.msra.mxu0 %v101
    %605 = vmatpush.msra.mxu0 %v97
    %606 = vmatpush.msra.mxu0 %v93
    %607 = vmatpush.msra.mxu0 %v89
    %608 = vmatpush.msra.mxu0 %v85
    %609 = vmatpush.msra.mxu0 %v81
    %610 = vmatpush.msra.mxu0 %v77
    %611 = vmatpush.msra.mxu0 %v73
    %612 = vmatpush.msra.mxu0 %v69
    %613 = vmatpush.msra.mxu0 %v65
    %614 = vmatpush.msra.mxu0 %v61
    %615 = vmatpush.msra.mxu0 %v57
    %616 = vmatmul.f32.gmra.mxu0 %v574
    %v617 = vpop.f32.mrf.mxu0
    %v618 = vadd.f32 0.0, %v617
    %619 = vdwg.mxu0
    %620 = vmatpush.msra.mxu0 %v118
    %621 = vmatpush.msra.mxu0 %v114
    %622 = vmatpush.msra.mxu0 %v110
    %623 = vmatpush.msra.mxu0 %v106
    %624 = vmatpush.msra.mxu0 %v102
    %625 = vmatpush.msra.mxu0 %v98
    %626 = vmatpush.msra.mxu0 %v94
    %627 = vmatpush.msra.mxu0 %v90
    %628 = vmatpush.msra.mxu0 %v86
    %629 = vmatpush.msra.mxu0 %v82
    %630 = vmatpush.msra.mxu0 %v78
    %631 = vmatpush.msra.mxu0 %v74
    %632 = vmatpush.msra.mxu0 %v70
    %633 = vmatpush.msra.mxu0 %v66
    %634 = vmatpush.msra.mxu0 %v62
    %635 = vmatpush.msra.mxu0 %v58
    %636 = vmatmul.f32.gmra.mxu0 %v574
    %v637 = vpop.f32.mrf.mxu0
    %v638 = vadd.f32 0.0, %v637
    %639 = vdwg.mxu0
    %640 = vmatpush.msra.mxu0 %v119
    %641 = vmatpush.msra.mxu0 %v115
    %642 = vmatpush.msra.mxu0 %v111
    %643 = vmatpush.msra.mxu0 %v107
    %644 = vmatpush.msra.mxu0 %v103
    %645 = vmatpush.msra.mxu0 %v99
    %646 = vmatpush.msra.mxu0 %v95
    %647 = vmatpush.msra.mxu0 %v91
    %648 = vmatpush.msra.mxu0 %v87
    %649 = vmatpush.msra.mxu0 %v83
    %650 = vmatpush.msra.mxu0 %v79
    %651 = vmatpush.msra.mxu0 %v75
    %652 = vmatpush.msra.mxu0 %v71
    %653 = vmatpush.msra.mxu0 %v67
    %654 = vmatpush.msra.mxu0 %v63
    %655 = vmatpush.msra.mxu0 %v59
    %656 = vmatmul.f32.gmra.mxu0 %v574
    %v657 = vpop.f32.mrf.mxu0
    %v658 = vadd.f32 0.0, %v657
    %659 = vdwg.mxu0
    %v660 = vadd.f32 %v576, %v598
    %v661 = vadd.f32 %v577, %v618
    %v662 = vadd.f32 %v578, %v638
    %v663 = vadd.f32 %v579, %v658
    %v664 = vxor.u32 %v660, 2147483648
    %v665 = vmul.f32 %v664, 1.442695
    %v666 = vpow.pop %v665
    %v667 = vadd.f32 %v666, 1.0
    %v668 = vrcp.pop %v667
    %v669 = vmul.f32 %v667, %v668
    %v670 = vsub.f32 1.0, %v669
    %v671 = vmul.f32 %v668, %v670
    %v672 = vadd.f32 %v668, %v671
    %vm673 = vweird.f32 %v667
    %vm674 = vweird.f32 %v668
    %vm675 = vmor %vm673, %vm674
    %v676 = vsel %vm675, %v668, %v672
    %v677 = vand.u32 2147483647, %v667
    %vm678 = vcmp.eq.f32.partialorder %v677, 8.507059e+37
    %v679 = vand.u32 %v667, 2147483648
    %v680 = vor.u32 1.1754944e-38, %v679
    %v681 = vsel %vm678, %v680, %v676
    %v682 = vmul.f32 1.0, %v681
    %v683 = vxor.u32 %v661, 2147483648
    %v684 = vmul.f32 %v683, 1.442695
    %v685 = vpow.pop %v684
    %v686 = vadd.f32 %v685, 1.0
    %v687 = vrcp.pop %v686
    %v688 = vmul.f32 %v686, %v687
    %v689 = vsub.f32 1.0, %v688
    %v690 = vmul.f32 %v687, %v689
    %v691 = vadd.f32 %v687, %v690
    %vm692 = vweird.f32 %v686
    %vm693 = vweird.f32 %v687
    %vm694 = vmor %vm692, %vm693
    %v695 = vsel %vm694, %v687, %v691
    %v696 = vand.u32 2147483647, %v686
    %vm697 = vcmp.eq.f32.partialorder %v696, 8.507059e+37
    %v698 = vand.u32 %v686, 2147483648
    %v699 = vor.u32 1.1754944e-38, %v698
    %v700 = vsel %vm697, %v699, %v695
    %v701 = vmul.f32 1.0, %v700
    %v702 = vtanh.pop %v662
    %v703 = vxor.u32 %v663, 2147483648
    %v704 = vmul.f32 %v703, 1.442695
    %v705 = vpow.pop %v704
    %v706 = vadd.f32 %v705, 1.0
    %v707 = vrcp.pop %v706
    %v708 = vmul.f32 %v706, %v707
    %v709 = vsub.f32 1.0, %v708
    %v710 = vmul.f32 %v707, %v709
    %v711 = vadd.f32 %v707, %v710
    %vm712 = vweird.f32 %v706
    %vm713 = vweird.f32 %v707
    %vm714 = vmor %vm712, %vm713
    %v715 = vsel %vm714, %v707, %v711
    %v716 = vand.u32 2147483647, %v706
    %vm717 = vcmp.eq.f32.partialorder %v716, 8.507059e+37
    %v718 = vand.u32 %v706, 2147483648
    %v719 = vor.u32 1.1754944e-38, %v718
    %v720 = vsel %vm717, %v719, %v715
    %v721 = vmul.f32 1.0, %v720
    %v722 = vmul.f32 %v701, %v572
    %v723 = vmul.f32 %v682, %v702
    %v724 = vadd.f32 %v722, %v723
    %v725 = vtanh.pop %v724
    %v726 = vmul.f32 %v721, %v725
    %s727 = scalar_lea.vmem [#allocation2], 128
    %v728 = vld [vmem:[%s727] sm:$0xff]
    %v729 = vld [vmem:[%s727 + $0x8] sm:$0xff]
    %v730 = vld [vmem:[%s727 + $0x10] sm:$0xff]
    %v731 = vld [vmem:[%s727 + $0x18] sm:$0xff]
    %732 = vmatpush.msra.mxu0 %v116
    %733 = vmatpush.msra.mxu0 %v112
    %734 = vmatpush.msra.mxu0 %v108
    %735 = vmatpush.msra.mxu0 %v104
    %736 = vmatpush.msra.mxu0 %v100
    %737 = vmatpush.msra.mxu0 %v96
    %738 = vmatpush.msra.mxu0 %v92
    %739 = vmatpush.msra.mxu0 %v88
    %740 = vmatpush.msra.mxu0 %v84
    %741 = vmatpush.msra.mxu0 %v80
    %742 = vmatpush.msra.mxu0 %v76
    %743 = vmatpush.msra.mxu0 %v72
    %744 = vmatpush.msra.mxu0 %v68
    %745 = vmatpush.msra.mxu0 %v64
    %746 = vmatpush.msra.mxu0 %v60
    %747 = vmatpush.msra.mxu0 %v56
    %748 = vmatmul.f32.gmra.mxu0 %v726
    %v749 = vpop.f32.mrf.mxu0
    %v750 = vadd.f32 0.0, %v749
    %751 = vdwg.mxu0
    %752 = vmatpush.msra.mxu0 %v117
    %753 = vmatpush.msra.mxu0 %v113
    %754 = vmatpush.msra.mxu0 %v109
    %755 = vmatpush.msra.mxu0 %v105
    %756 = vmatpush.msra.mxu0 %v101
    %757 = vmatpush.msra.mxu0 %v97
    %758 = vmatpush.msra.mxu0 %v93
    %759 = vmatpush.msra.mxu0 %v89
    %760 = vmatpush.msra.mxu0 %v85
    %761 = vmatpush.msra.mxu0 %v81
    %762 = vmatpush.msra.mxu0 %v77
    %763 = vmatpush.msra.mxu0 %v73
    %764 = vmatpush.msra.mxu0 %v69
    %765 = vmatpush.msra.mxu0 %v65
    %766 = vmatpush.msra.mxu0 %v61
    %767 = vmatpush.msra.mxu0 %v57
    %768 = vmatmul.f32.gmra.mxu0 %v726
    %v769 = vpop.f32.mrf.mxu0
    %v770 = vadd.f32 0.0, %v769
    %771 = vdwg.mxu0
    %772 = vmatpush.msra.mxu0 %v118
    %773 = vmatpush.msra.mxu0 %v114
    %774 = vmatpush.msra.mxu0 %v110
    %775 = vmatpush.msra.mxu0 %v106
    %776 = vmatpush.msra.mxu0 %v102
    %777 = vmatpush.msra.mxu0 %v98
    %778 = vmatpush.msra.mxu0 %v94
    %779 = vmatpush.msra.mxu0 %v90
    %780 = vmatpush.msra.mxu0 %v86
    %781 = vmatpush.msra.mxu0 %v82
    %782 = vmatpush.msra.mxu0 %v78
    %783 = vmatpush.msra.mxu0 %v74
    %784 = vmatpush.msra.mxu0 %v70
    %785 = vmatpush.msra.mxu0 %v66
    %786 = vmatpush.msra.mxu0 %v62
    %787 = vmatpush.msra.mxu0 %v58
    %788 = vmatmul.f32.gmra.mxu0 %v726
    %v789 = vpop.f32.mrf.mxu0
    %v790 = vadd.f32 0.0, %v789
    %791 = vdwg.mxu0
    %792 = vmatpush.msra.mxu0 %v119
    %793 = vmatpush.msra.mxu0 %v115
    %794 = vmatpush.msra.mxu0 %v111
    %795 = vmatpush.msra.mxu0 %v107
    %796 = vmatpush.msra.mxu0 %v103
    %797 = vmatpush.msra.mxu0 %v99
    %798 = vmatpush.msra.mxu0 %v95
    %799 = vmatpush.msra.mxu0 %v91
    %800 = vmatpush.msra.mxu0 %v87
    %801 = vmatpush.msra.mxu0 %v83
    %802 = vmatpush.msra.mxu0 %v79
    %803 = vmatpush.msra.mxu0 %v75
    %804 = vmatpush.msra.mxu0 %v71
    %805 = vmatpush.msra.mxu0 %v67
    %806 = vmatpush.msra.mxu0 %v63
    %807 = vmatpush.msra.mxu0 %v59
    %808 = vmatmul.f32.gmra.mxu0 %v726
    %v809 = vpop.f32.mrf.mxu0
    %v810 = vadd.f32 0.0, %v809
    %811 = vdwg.mxu0
    %v812 = vadd.f32 %v728, %v750
    %v813 = vadd.f32 %v729, %v770
    %v814 = vadd.f32 %v730, %v790
    %v815 = vadd.f32 %v731, %v810
    %v816 = vxor.u32 %v812, 2147483648
    %v817 = vmul.f32 %v816, 1.442695
    %v818 = vpow.pop %v817
    %v819 = vadd.f32 %v818, 1.0
    %v820 = vrcp.pop %v819
    %v821 = vmul.f32 %v819, %v820
    %v822 = vsub.f32 1.0, %v821
    %v823 = vmul.f32 %v820, %v822
    %v824 = vadd.f32 %v820, %v823
    %vm825 = vweird.f32 %v819
    %vm826 = vweird.f32 %v820
    %vm827 = vmor %vm825, %vm826
    %v828 = vsel %vm827, %v820, %v824
    %v829 = vand.u32 2147483647, %v819
    %vm830 = vcmp.eq.f32.partialorder %v829, 8.507059e+37
    %v831 = vand.u32 %v819, 2147483648
    %v832 = vor.u32 1.1754944e-38, %v831
    %v833 = vsel %vm830, %v832, %v828
    %v834 = vmul.f32 1.0, %v833
    %v835 = vxor.u32 %v813, 2147483648
    %v836 = vmul.f32 %v835, 1.442695
    %v837 = vpow.pop %v836
    %v838 = vadd.f32 %v837, 1.0
    %v839 = vrcp.pop %v838
    %v840 = vmul.f32 %v838, %v839
    %v841 = vsub.f32 1.0, %v840
    %v842 = vmul.f32 %v839, %v841
    %v843 = vadd.f32 %v839, %v842
    %vm844 = vweird.f32 %v838
    %vm845 = vweird.f32 %v839
    %vm846 = vmor %vm844, %vm845
    %v847 = vsel %vm846, %v839, %v843
    %v848 = vand.u32 2147483647, %v838
    %vm849 = vcmp.eq.f32.partialorder %v848, 8.507059e+37
    %v850 = vand.u32 %v838, 2147483648
    %v851 = vor.u32 1.1754944e-38, %v850
    %v852 = vsel %vm849, %v851, %v847
    %v853 = vmul.f32 1.0, %v852
    %v854 = vtanh.pop %v814
    %v855 = vxor.u32 %v815, 2147483648
    %v856 = vmul.f32 %v855, 1.442695
    %v857 = vpow.pop %v856
    %v858 = vadd.f32 %v857, 1.0
    %v859 = vrcp.pop %v858
    %v860 = vmul.f32 %v858, %v859
    %v861 = vsub.f32 1.0, %v860
    %v862 = vmul.f32 %v859, %v861
    %v863 = vadd.f32 %v859, %v862
    %vm864 = vweird.f32 %v858
    %vm865 = vweird.f32 %v859
    %vm866 = vmor %vm864, %vm865
    %v867 = vsel %vm866, %v859, %v863
    %v868 = vand.u32 2147483647, %v858
    %vm869 = vcmp.eq.f32.partialorder %v868, 8.507059e+37
    %v870 = vand.u32 %v858, 2147483648
    %v871 = vor.u32 1.1754944e-38, %v870
    %v872 = vsel %vm869, %v871, %v867
    %v873 = vmul.f32 1.0, %v872
    %v874 = vmul.f32 %v853, %v724
    %v875 = vmul.f32 %v834, %v854
    %v876 = vadd.f32 %v874, %v875
    %v877 = vtanh.pop %v876
    %v878 = vmul.f32 %v873, %v877
    %s879 = scalar_lea.vmem [#allocation2], 160
    %v880 = vld [vmem:[%s879] sm:$0xff]
    %v881 = vld [vmem:[%s879 + $0x8] sm:$0xff]
    %v882 = vld [vmem:[%s879 + $0x10] sm:$0xff]
    %v883 = vld [vmem:[%s879 + $0x18] sm:$0xff]
    %884 = vmatpush.msra.mxu0 %v116
    %885 = vmatpush.msra.mxu0 %v112
    %886 = vmatpush.msra.mxu0 %v108
    %887 = vmatpush.msra.mxu0 %v104
    %888 = vmatpush.msra.mxu0 %v100
    %889 = vmatpush.msra.mxu0 %v96
    %890 = vmatpush.msra.mxu0 %v92
    %891 = vmatpush.msra.mxu0 %v88
    %892 = vmatpush.msra.mxu0 %v84
    %893 = vmatpush.msra.mxu0 %v80
    %894 = vmatpush.msra.mxu0 %v76
    %895 = vmatpush.msra.mxu0 %v72
    %896 = vmatpush.msra.mxu0 %v68
    %897 = vmatpush.msra.mxu0 %v64
    %898 = vmatpush.msra.mxu0 %v60
    %899 = vmatpush.msra.mxu0 %v56
    %900 = vmatmul.f32.gmra.mxu0 %v878
    %v901 = vpop.f32.mrf.mxu0
    %v902 = vadd.f32 0.0, %v901
    %903 = vdwg.mxu0
    %904 = vmatpush.msra.mxu0 %v117
    %905 = vmatpush.msra.mxu0 %v113
    %906 = vmatpush.msra.mxu0 %v109
    %907 = vmatpush.msra.mxu0 %v105
    %908 = vmatpush.msra.mxu0 %v101
    %909 = vmatpush.msra.mxu0 %v97
    %910 = vmatpush.msra.mxu0 %v93
    %911 = vmatpush.msra.mxu0 %v89
    %912 = vmatpush.msra.mxu0 %v85
    %913 = vmatpush.msra.mxu0 %v81
    %914 = vmatpush.msra.mxu0 %v77
    %915 = vmatpush.msra.mxu0 %v73
    %916 = vmatpush.msra.mxu0 %v69
    %917 = vmatpush.msra.mxu0 %v65
    %918 = vmatpush.msra.mxu0 %v61
    %919 = vmatpush.msra.mxu0 %v57
    %920 = vmatmul.f32.gmra.mxu0 %v878
    %v921 = vpop.f32.mrf.mxu0
    %v922 = vadd.f32 0.0, %v921
    %923 = vdwg.mxu0
    %924 = vmatpush.msra.mxu0 %v118
    %925 = vmatpush.msra.mxu0 %v114
    %926 = vmatpush.msra.mxu0 %v110
    %927 = vmatpush.msra.mxu0 %v106
    %928 = vmatpush.msra.mxu0 %v102
    %929 = vmatpush.msra.mxu0 %v98
    %930 = vmatpush.msra.mxu0 %v94
    %931 = vmatpush.msra.mxu0 %v90
    %932 = vmatpush.msra.mxu0 %v86
    %933 = vmatpush.msra.mxu0 %v82
    %934 = vmatpush.msra.mxu0 %v78
    %935 = vmatpush.msra.mxu0 %v74
    %936 = vmatpush.msra.mxu0 %v70
    %937 = vmatpush.msra.mxu0 %v66
    %938 = vmatpush.msra.mxu0 %v62
    %939 = vmatpush.msra.mxu0 %v58
    %940 = vmatmul.f32.gmra.mxu0 %v878
    %v941 = vpop.f32.mrf.mxu0
    %v942 = vadd.f32 0.0, %v941
    %943 = vdwg.mxu0
    %944 = vmatpush.msra.mxu0 %v119
    %945 = vmatpush.msra.mxu0 %v115
    %946 = vmatpush.msra.mxu0 %v111
    %947 = vmatpush.msra.mxu0 %v107
    %948 = vmatpush.msra.mxu0 %v103
    %949 = vmatpush.msra.mxu0 %v99
    %950 = vmatpush.msra.mxu0 %v95
    %951 = vmatpush.msra.mxu0 %v91
    %952 = vmatpush.msra.mxu0 %v87
    %953 = vmatpush.msra.mxu0 %v83
    %954 = vmatpush.msra.mxu0 %v79
    %955 = vmatpush.msra.mxu0 %v75
    %956 = vmatpush.msra.mxu0 %v71
    %957 = vmatpush.msra.mxu0 %v67
    %958 = vmatpush.msra.mxu0 %v63
    %959 = vmatpush.msra.mxu0 %v59
    %960 = vmatmul.f32.gmra.mxu0 %v878
    %v961 = vpop.f32.mrf.mxu0
    %v962 = vadd.f32 0.0, %v961
    %963 = vdwg.mxu0
    %v964 = vadd.f32 %v880, %v902
    %v965 = vadd.f32 %v881, %v922
    %v966 = vadd.f32 %v882, %v942
    %v967 = vadd.f32 %v883, %v962
    %v968 = vxor.u32 %v964, 2147483648
    %v969 = vmul.f32 %v968, 1.442695
    %v970 = vpow.pop %v969
    %v971 = vadd.f32 %v970, 1.0
    %v972 = vrcp.pop %v971
    %v973 = vmul.f32 %v971, %v972
    %v974 = vsub.f32 1.0, %v973
    %v975 = vmul.f32 %v972, %v974
    %v976 = vadd.f32 %v972, %v975
    %vm977 = vweird.f32 %v971
    %vm978 = vweird.f32 %v972
    %vm979 = vmor %vm977, %vm978
    %v980 = vsel %vm979, %v972, %v976
    %v981 = vand.u32 2147483647, %v971
    %vm982 = vcmp.eq.f32.partialorder %v981, 8.507059e+37
    %v983 = vand.u32 %v971, 2147483648
    %v984 = vor.u32 1.1754944e-38, %v983
    %v985 = vsel %vm982, %v984, %v980
    %v986 = vmul.f32 1.0, %v985
    %v987 = vxor.u32 %v965, 2147483648
    %v988 = vmul.f32 %v987, 1.442695
    %v989 = vpow.pop %v988
    %v990 = vadd.f32 %v989, 1.0
    %v991 = vrcp.pop %v990
    %v992 = vmul.f32 %v990, %v991
    %v993 = vsub.f32 1.0, %v992
    %v994 = vmul.f32 %v991, %v993
    %v995 = vadd.f32 %v991, %v994
    %vm996 = vweird.f32 %v990
    %vm997 = vweird.f32 %v991
    %vm998 = vmor %vm996, %vm997
    %v999 = vsel %vm998, %v991, %v995
    %v1000 = vand.u32 2147483647, %v990
    %vm1001 = vcmp.eq.f32.partialorder %v1000, 8.507059e+37
    %v1002 = vand.u32 %v990, 2147483648
    %v1003 = vor.u32 1.1754944e-38, %v1002
    %v1004 = vsel %vm1001, %v1003, %v999
    %v1005 = vmul.f32 1.0, %v1004
    %v1006 = vtanh.pop %v966
    %v1007 = vxor.u32 %v967, 2147483648
    %v1008 = vmul.f32 %v1007, 1.442695
    %v1009 = vpow.pop %v1008
    %v1010 = vadd.f32 %v1009, 1.0
    %v1011 = vrcp.pop %v1010
    %v1012 = vmul.f32 %v1010, %v1011
    %v1013 = vsub.f32 1.0, %v1012
    %v1014 = vmul.f32 %v1011, %v1013
    %v1015 = vadd.f32 %v1011, %v1014
    %vm1016 = vweird.f32 %v1010
    %vm1017 = vweird.f32 %v1011
    %vm1018 = vmor %vm1016, %vm1017
    %v1019 = vsel %vm1018, %v1011, %v1015
    %v1020 = vand.u32 2147483647, %v1010
    %vm1021 = vcmp.eq.f32.partialorder %v1020, 8.507059e+37
    %v1022 = vand.u32 %v1010, 2147483648
    %v1023 = vor.u32 1.1754944e-38, %v1022
    %v1024 = vsel %vm1021, %v1023, %v1019
    %v1025 = vmul.f32 1.0, %v1024
    %v1026 = vmul.f32 %v1005, %v876
    %v1027 = vmul.f32 %v986, %v1006
    %v1028 = vadd.f32 %v1026, %v1027
    %v1029 = vtanh.pop %v1028
    %v1030 = vmul.f32 %v1025, %v1029
    %s1031 = scalar_lea.vmem [#allocation2], 192
    %v1032 = vld [vmem:[%s1031] sm:$0xff]
    %v1033 = vld [vmem:[%s1031 + $0x8] sm:$0xff]
    %v1034 = vld [vmem:[%s1031 + $0x10] sm:$0xff]
    %v1035 = vld [vmem:[%s1031 + $0x18] sm:$0xff]
    %1036 = vmatpush.msra.mxu0 %v116
    %1037 = vmatpush.msra.mxu0 %v112
    %1038 = vmatpush.msra.mxu0 %v108
    %1039 = vmatpush.msra.mxu0 %v104
    %1040 = vmatpush.msra.mxu0 %v100
    %1041 = vmatpush.msra.mxu0 %v96
    %1042 = vmatpush.msra.mxu0 %v92
    %1043 = vmatpush.msra.mxu0 %v88
    %1044 = vmatpush.msra.mxu0 %v84
    %1045 = vmatpush.msra.mxu0 %v80
    %1046 = vmatpush.msra.mxu0 %v76
    %1047 = vmatpush.msra.mxu0 %v72
    %1048 = vmatpush.msra.mxu0 %v68
    %1049 = vmatpush.msra.mxu0 %v64
    %1050 = vmatpush.msra.mxu0 %v60
    %1051 = vmatpush.msra.mxu0 %v56
    %1052 = vmatmul.f32.gmra.mxu0 %v1030
    %v1053 = vpop.f32.mrf.mxu0
    %v1054 = vadd.f32 0.0, %v1053
    %1055 = vdwg.mxu0
    %1056 = vmatpush.msra.mxu0 %v117
    %1057 = vmatpush.msra.mxu0 %v113
    %1058 = vmatpush.msra.mxu0 %v109
    %1059 = vmatpush.msra.mxu0 %v105
    %1060 = vmatpush.msra.mxu0 %v101
    %1061 = vmatpush.msra.mxu0 %v97
    %1062 = vmatpush.msra.mxu0 %v93
    %1063 = vmatpush.msra.mxu0 %v89
    %1064 = vmatpush.msra.mxu0 %v85
    %1065 = vmatpush.msra.mxu0 %v81
    %1066 = vmatpush.msra.mxu0 %v77
    %1067 = vmatpush.msra.mxu0 %v73
    %1068 = vmatpush.msra.mxu0 %v69
    %1069 = vmatpush.msra.mxu0 %v65
    %1070 = vmatpush.msra.mxu0 %v61
    %1071 = vmatpush.msra.mxu0 %v57
    %1072 = vmatmul.f32.gmra.mxu0 %v1030
    %v1073 = vpop.f32.mrf.mxu0
    %v1074 = vadd.f32 0.0, %v1073
    %1075 = vdwg.mxu0
    %1076 = vmatpush.msra.mxu0 %v118
    %1077 = vmatpush.msra.mxu0 %v114
    %1078 = vmatpush.msra.mxu0 %v110
    %1079 = vmatpush.msra.mxu0 %v106
    %1080 = vmatpush.msra.mxu0 %v102
    %1081 = vmatpush.msra.mxu0 %v98
    %1082 = vmatpush.msra.mxu0 %v94
    %1083 = vmatpush.msra.mxu0 %v90
    %1084 = vmatpush.msra.mxu0 %v86
    %1085 = vmatpush.msra.mxu0 %v82
    %1086 = vmatpush.msra.mxu0 %v78
    %1087 = vmatpush.msra.mxu0 %v74
    %1088 = vmatpush.msra.mxu0 %v70
    %1089 = vmatpush.msra.mxu0 %v66
    %1090 = vmatpush.msra.mxu0 %v62
    %1091 = vmatpush.msra.mxu0 %v58
    %1092 = vmatmul.f32.gmra.mxu0 %v1030
    %v1093 = vpop.f32.mrf.mxu0
    %v1094 = vadd.f32 0.0, %v1093
    %1095 = vdwg.mxu0
    %1096 = vmatpush.msra.mxu0 %v119
    %1097 = vmatpush.msra.mxu0 %v115
    %1098 = vmatpush.msra.mxu0 %v111
    %1099 = vmatpush.msra.mxu0 %v107
    %1100 = vmatpush.msra.mxu0 %v103
    %1101 = vmatpush.msra.mxu0 %v99
    %1102 = vmatpush.msra.mxu0 %v95
    %1103 = vmatpush.msra.mxu0 %v91
    %1104 = vmatpush.msra.mxu0 %v87
    %1105 = vmatpush.msra.mxu0 %v83
    %1106 = vmatpush.msra.mxu0 %v79
    %1107 = vmatpush.msra.mxu0 %v75
    %1108 = vmatpush.msra.mxu0 %v71
    %1109 = vmatpush.msra.mxu0 %v67
    %1110 = vmatpush.msra.mxu0 %v63
    %1111 = vmatpush.msra.mxu0 %v59
    %1112 = vmatmul.f32.gmra.mxu0 %v1030
    %v1113 = vpop.f32.mrf.mxu0
    %v1114 = vadd.f32 0.0, %v1113
    %1115 = vdwg.mxu0
    %v1116 = vadd.f32 %v1032, %v1054
    %v1117 = vadd.f32 %v1033, %v1074
    %v1118 = vadd.f32 %v1034, %v1094
    %v1119 = vadd.f32 %v1035, %v1114
    %v1120 = vxor.u32 %v1116, 2147483648
    %v1121 = vmul.f32 %v1120, 1.442695
    %v1122 = vpow.pop %v1121
    %v1123 = vadd.f32 %v1122, 1.0
    %v1124 = vrcp.pop %v1123
    %v1125 = vmul.f32 %v1123, %v1124
    %v1126 = vsub.f32 1.0, %v1125
    %v1127 = vmul.f32 %v1124, %v1126
    %v1128 = vadd.f32 %v1124, %v1127
    %vm1129 = vweird.f32 %v1123
    %vm1130 = vweird.f32 %v1124
    %vm1131 = vmor %vm1129, %vm1130
    %v1132 = vsel %vm1131, %v1124, %v1128
    %v1133 = vand.u32 2147483647, %v1123
    %vm1134 = vcmp.eq.f32.partialorder %v1133, 8.507059e+37
    %v1135 = vand.u32 %v1123, 2147483648
    %v1136 = vor.u32 1.1754944e-38, %v1135
    %v1137 = vsel %vm1134, %v1136, %v1132
    %v1138 = vmul.f32 1.0, %v1137
    %v1139 = vxor.u32 %v1117, 2147483648
    %v1140 = vmul.f32 %v1139, 1.442695
    %v1141 = vpow.pop %v1140
    %v1142 = vadd.f32 %v1141, 1.0
    %v1143 = vrcp.pop %v1142
    %v1144 = vmul.f32 %v1142, %v1143
    %v1145 = vsub.f32 1.0, %v1144
    %v1146 = vmul.f32 %v1143, %v1145
    %v1147 = vadd.f32 %v1143, %v1146
    %vm1148 = vweird.f32 %v1142
    %vm1149 = vweird.f32 %v1143
    %vm1150 = vmor %vm1148, %vm1149
    %v1151 = vsel %vm1150, %v1143, %v1147
    %v1152 = vand.u32 2147483647, %v1142
    %vm1153 = vcmp.eq.f32.partialorder %v1152, 8.507059e+37
    %v1154 = vand.u32 %v1142, 2147483648
    %v1155 = vor.u32 1.1754944e-38, %v1154
    %v1156 = vsel %vm1153, %v1155, %v1151
    %v1157 = vmul.f32 1.0, %v1156
    %v1158 = vtanh.pop %v1118
    %v1159 = vxor.u32 %v1119, 2147483648
    %v1160 = vmul.f32 %v1159, 1.442695
    %v1161 = vpow.pop %v1160
    %v1162 = vadd.f32 %v1161, 1.0
    %v1163 = vrcp.pop %v1162
    %v1164 = vmul.f32 %v1162, %v1163
    %v1165 = vsub.f32 1.0, %v1164
    %v1166 = vmul.f32 %v1163, %v1165
    %v1167 = vadd.f32 %v1163, %v1166
    %vm1168 = vweird.f32 %v1162
    %vm1169 = vweird.f32 %v1163
    %vm1170 = vmor %vm1168, %vm1169
    %v1171 = vsel %vm1170, %v1163, %v1167
    %v1172 = vand.u32 2147483647, %v1162
    %vm1173 = vcmp.eq.f32.partialorder %v1172, 8.507059e+37
    %v1174 = vand.u32 %v1162, 2147483648
    %v1175 = vor.u32 1.1754944e-38, %v1174
    %v1176 = vsel %vm1173, %v1175, %v1171
    %v1177 = vmul.f32 1.0, %v1176
    %v1178 = vmul.f32 %v1157, %v1028
    %v1179 = vmul.f32 %v1138, %v1158
    %v1180 = vadd.f32 %v1178, %v1179
    %v1181 = vtanh.pop %v1180
    %v1182 = vmul.f32 %v1177, %v1181
    %s1183 = scalar_lea.vmem [#allocation2], 224
    %v1184 = vld [vmem:[%s1183] sm:$0xff]
    %v1185 = vld [vmem:[%s1183 + $0x8] sm:$0xff]
    %v1186 = vld [vmem:[%s1183 + $0x10] sm:$0xff]
    %v1187 = vld [vmem:[%s1183 + $0x18] sm:$0xff]
    %1188 = vmatpush.msra.mxu0 %v116
    %1189 = vmatpush.msra.mxu0 %v112
    %1190 = vmatpush.msra.mxu0 %v108
    %1191 = vmatpush.msra.mxu0 %v104
    %1192 = vmatpush.msra.mxu0 %v100
    %1193 = vmatpush.msra.mxu0 %v96
    %1194 = vmatpush.msra.mxu0 %v92
    %1195 = vmatpush.msra.mxu0 %v88
    %1196 = vmatpush.msra.mxu0 %v84
    %1197 = vmatpush.msra.mxu0 %v80
    %1198 = vmatpush.msra.mxu0 %v76
    %1199 = vmatpush.msra.mxu0 %v72
    %1200 = vmatpush.msra.mxu0 %v68
    %1201 = vmatpush.msra.mxu0 %v64
    %1202 = vmatpush.msra.mxu0 %v60
    %1203 = vmatpush.msra.mxu0 %v56
    %1204 = vmatmul.f32.gmra.mxu0 %v1182
    %v1205 = vpop.f32.mrf.mxu0
    %v1206 = vadd.f32 0.0, %v1205
    %1207 = vdwg.mxu0
    %1208 = vmatpush.msra.mxu0 %v117
    %1209 = vmatpush.msra.mxu0 %v113
    %1210 = vmatpush.msra.mxu0 %v109
    %1211 = vmatpush.msra.mxu0 %v105
    %1212 = vmatpush.msra.mxu0 %v101
    %1213 = vmatpush.msra.mxu0 %v97
    %1214 = vmatpush.msra.mxu0 %v93
    %1215 = vmatpush.msra.mxu0 %v89
    %1216 = vmatpush.msra.mxu0 %v85
    %1217 = vmatpush.msra.mxu0 %v81
    %1218 = vmatpush.msra.mxu0 %v77
    %1219 = vmatpush.msra.mxu0 %v73
    %1220 = vmatpush.msra.mxu0 %v69
    %1221 = vmatpush.msra.mxu0 %v65
    %1222 = vmatpush.msra.mxu0 %v61
    %1223 = vmatpush.msra.mxu0 %v57
    %1224 = vmatmul.f32.gmra.mxu0 %v1182
    %v1225 = vpop.f32.mrf.mxu0
    %v1226 = vadd.f32 0.0, %v1225
    %1227 = vdwg.mxu0
    %1228 = vmatpush.msra.mxu0 %v118
    %1229 = vmatpush.msra.mxu0 %v114
    %1230 = vmatpush.msra.mxu0 %v110
    %1231 = vmatpush.msra.mxu0 %v106
    %1232 = vmatpush.msra.mxu0 %v102
    %1233 = vmatpush.msra.mxu0 %v98
    %1234 = vmatpush.msra.mxu0 %v94
    %1235 = vmatpush.msra.mxu0 %v90
    %1236 = vmatpush.msra.mxu0 %v86
    %1237 = vmatpush.msra.mxu0 %v82
    %1238 = vmatpush.msra.mxu0 %v78
    %1239 = vmatpush.msra.mxu0 %v74
    %1240 = vmatpush.msra.mxu0 %v70
    %1241 = vmatpush.msra.mxu0 %v66
    %1242 = vmatpush.msra.mxu0 %v62
    %1243 = vmatpush.msra.mxu0 %v58
    %1244 = vmatmul.f32.gmra.mxu0 %v1182
    %v1245 = vpop.f32.mrf.mxu0
    %v1246 = vadd.f32 0.0, %v1245
    %1247 = vdwg.mxu0
    %1248 = vmatpush.msra.mxu0 %v119
    %1249 = vmatpush.msra.mxu0 %v115
    %1250 = vmatpush.msra.mxu0 %v111
    %1251 = vmatpush.msra.mxu0 %v107
    %1252 = vmatpush.msra.mxu0 %v103
    %1253 = vmatpush.msra.mxu0 %v99
    %1254 = vmatpush.msra.mxu0 %v95
    %1255 = vmatpush.msra.mxu0 %v91
    %1256 = vmatpush.msra.mxu0 %v87
    %1257 = vmatpush.msra.mxu0 %v83
    %1258 = vmatpush.msra.mxu0 %v79
    %1259 = vmatpush.msra.mxu0 %v75
    %1260 = vmatpush.msra.mxu0 %v71
    %1261 = vmatpush.msra.mxu0 %v67
    %1262 = vmatpush.msra.mxu0 %v63
    %1263 = vmatpush.msra.mxu0 %v59
    %1264 = vmatmul.f32.gmra.mxu0 %v1182
    %v1265 = vpop.f32.mrf.mxu0
    %v1266 = vadd.f32 0.0, %v1265
    %1267 = vdwg.mxu0
    %v1268 = vadd.f32 %v1184, %v1206
    %v1269 = vadd.f32 %v1185, %v1226
    %v1270 = vadd.f32 %v1186, %v1246
    %v1271 = vadd.f32 %v1187, %v1266
    %v1272 = vxor.u32 %v1268, 2147483648
    %v1273 = vmul.f32 %v1272, 1.442695
    %v1274 = vpow.pop %v1273
    %v1275 = vadd.f32 %v1274, 1.0
    %v1276 = vrcp.pop %v1275
    %v1277 = vmul.f32 %v1275, %v1276
    %v1278 = vsub.f32 1.0, %v1277
    %v1279 = vmul.f32 %v1276, %v1278
    %v1280 = vadd.f32 %v1276, %v1279
    %vm1281 = vweird.f32 %v1275
    %vm1282 = vweird.f32 %v1276
    %vm1283 = vmor %vm1281, %vm1282
    %v1284 = vsel %vm1283, %v1276, %v1280
    %v1285 = vand.u32 2147483647, %v1275
    %vm1286 = vcmp.eq.f32.partialorder %v1285, 8.507059e+37
    %v1287 = vand.u32 %v1275, 2147483648
    %v1288 = vor.u32 1.1754944e-38, %v1287
    %v1289 = vsel %vm1286, %v1288, %v1284
    %v1290 = vmul.f32 1.0, %v1289
    %v1291 = vxor.u32 %v1269, 2147483648
    %v1292 = vmul.f32 %v1291, 1.442695
    %v1293 = vpow.pop %v1292
    %v1294 = vadd.f32 %v1293, 1.0
    %v1295 = vrcp.pop %v1294
    %v1296 = vmul.f32 %v1294, %v1295
    %v1297 = vsub.f32 1.0, %v1296
    %v1298 = vmul.f32 %v1295, %v1297
    %v1299 = vadd.f32 %v1295, %v1298
    %vm1300 = vweird.f32 %v1294
    %vm1301 = vweird.f32 %v1295
    %vm1302 = vmor %vm1300, %vm1301
    %v1303 = vsel %vm1302, %v1295, %v1299
    %v1304 = vand.u32 2147483647, %v1294
    %vm1305 = vcmp.eq.f32.partialorder %v1304, 8.507059e+37
    %v1306 = vand.u32 %v1294, 2147483648
    %v1307 = vor.u32 1.1754944e-38, %v1306
    %v1308 = vsel %vm1305, %v1307, %v1303
    %v1309 = vmul.f32 1.0, %v1308
    %v1310 = vtanh.pop %v1270
    %v1311 = vxor.u32 %v1271, 2147483648
    %v1312 = vmul.f32 %v1311, 1.442695
    %v1313 = vpow.pop %v1312
    %v1314 = vadd.f32 %v1313, 1.0
    %v1315 = vrcp.pop %v1314
    %v1316 = vmul.f32 %v1314, %v1315
    %v1317 = vsub.f32 1.0, %v1316
    %v1318 = vmul.f32 %v1315, %v1317
    %v1319 = vadd.f32 %v1315, %v1318
    %vm1320 = vweird.f32 %v1314
    %vm1321 = vweird.f32 %v1315
    %vm1322 = vmor %vm1320, %vm1321
    %v1323 = vsel %vm1322, %v1315, %v1319
    %v1324 = vand.u32 2147483647, %v1314
    %vm1325 = vcmp.eq.f32.partialorder %v1324, 8.507059e+37
    %v1326 = vand.u32 %v1314, 2147483648
    %v1327 = vor.u32 1.1754944e-38, %v1326
    %v1328 = vsel %vm1325, %v1327, %v1323
    %v1329 = vmul.f32 1.0, %v1328
    %v1330 = vmul.f32 %v1309, %v1180
    %v1331 = vmul.f32 %v1290, %v1310
    %v1332 = vadd.f32 %v1330, %v1331
    %v1333 = vtanh.pop %v1332
    %v1334 = vmul.f32 %v1329, %v1333
    %v1335 = vld [vmem:[%s2] sm:$0xff]
    %v1336 = vld [vmem:[%s2 + $0x8] sm:$0xff]
    %v1337 = vld [vmem:[%s2 + $0x10] sm:$0xff]
    %v1338 = vld [vmem:[%s2 + $0x18] sm:$0xff]
    %v1339 = vld [vmem:[%s2 + $0x20] sm:$0xff]
    %v1340 = vld [vmem:[%s2 + $0x28] sm:$0xff]
    %v1341 = vld [vmem:[%s2 + $0x30] sm:$0xff]
    %v1342 = vld [vmem:[%s2 + $0x38] sm:$0xff]
    %v1343 = vld [vmem:[%s2 + $0x40] sm:$0xff]
    %v1344 = vld [vmem:[%s2 + $0x48] sm:$0xff]
    %v1345 = vld [vmem:[%s2 + $0x50] sm:$0xff]
    %v1346 = vld [vmem:[%s2 + $0x58] sm:$0xff]
    %v1347 = vld [vmem:[%s2 + $0x60] sm:$0xff]
    %v1348 = vld [vmem:[%s2 + $0x68] sm:$0xff]
    %v1349 = vld [vmem:[%s2 + $0x70] sm:$0xff]
    %v1350 = vld [vmem:[%s2 + $0x78] sm:$0xff]
    %v1351 = vld [vmem:[%s3] sm:$0x1]
    %v1353 = vperm.slane %v1351, 0
    %1355 = vmatpush.msra.mxu0 %v1350
    %1356 = vmatpush.msra.mxu0 %v1349
    %1357 = vmatpush.msra.mxu0 %v1348
    %1358 = vmatpush.msra.mxu0 %v1347
    %1359 = vmatpush.msra.mxu0 %v1346
    %1360 = vmatpush.msra.mxu0 %v1345
    %1361 = vmatpush.msra.mxu0 %v1344
    %1362 = vmatpush.msra.mxu0 %v1343
    %1363 = vmatpush.msra.mxu0 %v1342
    %1364 = vmatpush.msra.mxu0 %v1341
    %1365 = vmatpush.msra.mxu0 %v1340
    %1366 = vmatpush.msra.mxu0 %v1339
    %1367 = vmatpush.msra.mxu0 %v1338
    %1368 = vmatpush.msra.mxu0 %v1337
    %1369 = vmatpush.msra.mxu0 %v1336
    %1370 = vmatpush.msra.mxu0 %v1335
    %1371 = vmatmul.f32.gmra.mxu0 %v1334
    %v1372 = vpop.f32.mrf.mxu0
    %v1373 = vadd.f32 %v1353, %v1372
    %1374 = vdwg.mxu0
    %v1375 = vmax.f32 %v1373, 0.0
    %v1376 = vld [vmem:[%s4] sm:$0xff]
    %v1377 = vld [vmem:[%s4 + $0x8] sm:$0xff]
    %v1378 = vld [vmem:[%s4 + $0x10] sm:$0xff]
    %v1379 = vld [vmem:[%s4 + $0x18] sm:$0xff]
    %v1380 = vld [vmem:[%s4 + $0x20] sm:$0xff]
    %v1381 = vld [vmem:[%s4 + $0x28] sm:$0xff]
    %v1382 = vld [vmem:[%s4 + $0x30] sm:$0xff]
    %v1383 = vld [vmem:[%s4 + $0x38] sm:$0xff]
    %v1384 = vld [vmem:[%s5] sm:$0x1]
    %v1386 = vperm.slane %v1384, 0
    %vm1388 = vcmask 523264
    %v1390 = vsel %vm1388, %v1375, 0
    %1392 = vmatpush.msra.mxu0 0.0
    %1393 = vmatpush.msra.mxu0 0.0
    %1394 = vmatpush.msra.mxu0 0.0
    %1395 = vmatpush.msra.mxu0 0.0
    %1396 = vmatpush.msra.mxu0 0.0
    %1397 = vmatpush.msra.mxu0 0.0
    %1398 = vmatpush.msra.mxu0 0.0
    %1399 = vmatpush.msra.mxu0 0.0
    %1400 = vmatpush.msra.mxu0 %v1383
    %1401 = vmatpush.msra.mxu0 %v1382
    %1402 = vmatpush.msra.mxu0 %v1381
    %1403 = vmatpush.msra.mxu0 %v1380
    %1404 = vmatpush.msra.mxu0 %v1379
    %1405 = vmatpush.msra.mxu0 %v1378
    %1406 = vmatpush.msra.mxu0 %v1377
    %1407 = vmatpush.msra.mxu0 %v1376
    %1408 = vmatmul.f32.gmra.mxu0 %v1390
    %v1409 = vpop.f32.mrf.mxu0
    %v1410 = vadd.f32 %v1386, %v1409
    %1411 = vdwg.mxu0
    %v1412 = vmax.f32 %v1410, 0.0
    %vm1413 = vcmask 171008
    %1414 = vst.msk [vmem:[#allocation7] sm:$0xff] %vm1413, %v1412
    // Predicated region
    $region34: #{tpu_custom_call.1} parent=1 // pred_check
      _
    $region35: #{tpu_custom_call.1} parent=1 // pred_check_branch
      %1416 = sbr.rel (0) target = $region37
    $region36: #{tpu_custom_call.1} parent=1 // pred_region
      %1418 = vsyncadd [#allocation4], 0
      %s1420 = sshll.u32 [#allocation7], 4
      %s1421 = int_to_ptr.vmem [resolvable:$true] %s1420
      %s1422 = sshll.u32 %s6, 4
      %s1423 = int_to_ptr.hbm [resolvable:$true] %s1422
      %1425 = dma.vmem_to_hbm [thread:$0]  %s1421, 128, %s1423, [#allocation4]
    $region37: #{tpu_custom_call.1} parent=1 // pred_fallthru
      _
    // Predicated region
    $region38: #{tpu_custom_call.1} parent=1 // pred_check
      _
    $region39: #{tpu_custom_call.1} parent=1 // pred_check_branch
      %1427 = sbr.rel (0) target = $region41
    $region40: #{tpu_custom_call.1} parent=1 // pred_region
      %1429 = dma.done [#allocation4], 128
    $region41: #{tpu_custom_call.1} parent=1 // pred_fallthru
      _
    %1430 = vsyncpa [#allocation3], 1
    %1431 = vsyncpa [#allocation6], 1
    %1432 = vsyncpa [#allocation4], 1

</llo_original>
